<compile_context>
chip_gen: v7x
topology: tpu7x:2x2x1
jax: 0.10.0
libtpu: 0.0.40
codegen_flags: <defaults>
</compile_context>

<pallas_src>
import functools

import jax
import jax.numpy as jnp
from jax.experimental import pallas as pl
from jax.experimental.pallas import tpu as pltpu


def _round_up(x, m):
    return ((x + m - 1) // m) * m


def _joint_likelihood_kernel(x_ref, lp_ref, w1sa_ref, w1lat_ref, b1_ref, *rest):
    """One row-tile of the joint preference likelihood (feature-major).

    x_ref    : (4, S+A, TN) bf16  one-hot features, streams on dim 0, rows on lanes
    lp_ref   : (L, 1)       f32   softmax(latent_logits) column
    w1sa_ref : (H, S+A)     bf16  first-layer weight^T, state+action part
    w1lat_ref: (L, H, 1)    f32   first-layer weight rows for the latent one-hot
    b1_ref   : (H, 1)       f32
    rest     : (w_i^T (H,H), b_i (H,1)) per extra hidden layer, then
               w_out (H, 1), then outputs prob_n_ref (1, TN), prob_nl_ref (L, TN)
    """
    n_hidden = (len(rest) - 3) // 2
    hidden = [(rest[2 * i], rest[2 * i + 1]) for i in range(n_hidden)]
    wout_ref = rest[2 * n_hidden]
    prob_n_ref = rest[2 * n_hidden + 1]
    prob_nl_ref = rest[2 * n_hidden + 2]

    latent_dim = w1lat_ref.shape[0]
    hsize = b1_ref.shape[0]
    tn = x_ref.shape[2]
    l4 = 4 * latent_dim

    # ---- first layer: batched (4,H,SA) @ (4,SA,TN) -> (4,H,TN); bf16 MXU, f32 acc
    x = x_ref[...]                                              # (4, SA, TN) bf16
    w1b = jnp.broadcast_to(w1sa_ref[...][None], (4,) + w1sa_ref.shape)
    h0 = jax.lax.dot_general(
        w1b, x, dimension_numbers=(((2,), (1,)), ((0,), (0,))),
        preferred_element_type=jnp.float32)                     # (4, H, TN) f32

    # ---- fold the latent dim in as a broadcast add (no concat / copies):
    #      column u of the latent one-hot contributes w1_lat[u] to the preact.
    h = jnp.tanh(h0[:, None, :, :]                              # (4, 1, H, TN)
                 + w1lat_ref[...][None, :, :, :]                # (1, L, H, 1)
                 + b1_ref[...][None, None, :, :])               # (1, 1, H, 1)
    h = h.reshape(l4, hsize, tn)                                # leading-dim merge: free

    # ---- hidden layers: feature-major batched matmuls, full-lane tanh
    for w_ref, b_ref in hidden:
        wb = jnp.broadcast_to(w_ref[...][None], (l4,) + w_ref.shape)
        h = jnp.tanh(
            jax.lax.dot_general(
                wb, h, dimension_numbers=(((2,), (1,)), ((0,), (0,))),
                preferred_element_type=jnp.float32)
            + b_ref[...][None])                                 # (l4, H, TN)

    # ---- final Linear(H, 1) as VPU multiply + sublane reduction.
    #      b_out is intentionally dropped: it cancels exactly in r2 - r1.
    wout = wout_ref[...]                                        # (H, 1)

    def stream_rewards(s):
        hs = h[s * latent_dim:(s + 1) * latent_dim]             # (L, H, TN) free slice
        return jnp.sum(hs * wout[None], axis=1)                 # (L, TN)

    p_left = jax.nn.sigmoid(stream_rewards(1) - stream_rewards(0))   # (L, TN)
    p_right = jax.nn.sigmoid(stream_rewards(3) - stream_rewards(2))  # (L, TN)
    prob_nl = p_left * p_right                                  # (L, TN) lane-dense
    prob_nl_ref[...] = prob_nl
    prob_n_ref[...] = jnp.sum(prob_nl * lp_ref[...], axis=0, keepdims=True)  # (1, TN)


def init_params(key, n_state, n_action, n_layer, size, latent_dim):
    d_in = n_state + n_action + latent_dim
    params = {}
    keys = jax.random.split(key, 2 * (n_layer + 1))
    k_idx = 0

    def lin(kw, kb, fan_in, fan_out):
        w = jax.random.normal(kw, (fan_in, fan_out), jnp.float32) / jnp.sqrt(fan_in)
        b = jax.random.normal(kb, (1, fan_out), jnp.float32) * 0.01
        return w, b

    w1, b1 = lin(keys[k_idx], keys[k_idx + 1], d_in, size)
    k_idx += 2
    params["w1_sa"] = w1[: n_state + n_action]
    params["w1_lat"] = w1[n_state + n_action:]
    params["b1"] = b1
    for i in range(n_layer - 1):
        w, b = lin(keys[k_idx], keys[k_idx + 1], size, size)
        k_idx += 2
        params[f"w{i + 2}"] = w
        params[f"b{i + 2}"] = b
    w_out, b_out = lin(keys[k_idx], keys[k_idx + 1], size, 1)
    params["w_out"] = w_out
    params["b_out"] = b_out
    params["latent_logits"] = jnp.zeros((latent_dim,), jnp.float32)
    return params


def multi_reward_forward(states_l, a1_l, a2_l, states_r, a1_r, a2_r, params,
                         *, n_state, n_action, latent_dim, n_layer):
    n = states_l.shape[0]
    sa = n_state + n_action
    size = params["b1"].shape[1]

    def feats_t(s, a):
        # feature-major one-hot features (S+A, n); exact in bf16 (values 0/1)
        return jnp.concatenate(
            [jax.nn.one_hot(s, n_state, axis=0, dtype=jnp.bfloat16),
             jax.nn.one_hot(a, n_action, axis=0, dtype=jnp.bfloat16)], axis=0)

    # streams: 0=left/a1, 1=left/a2, 2=right/a1, 3=right/a2
    x_all = jnp.stack([feats_t(states_l, a1_l), feats_t(states_l, a2_l),
                       feats_t(states_r, a1_r), feats_t(states_r, a2_r)],
                      axis=0)                                   # (4, S+A, n) bf16

    # Lane-dense row tile: multiple of 128, cap 1024, and at least 2 grid
    # steps when the batch allows it (v7x has 2 TensorCores per chip).
    if n <= 128:
        tn = 128
    else:
        tn = min(1024, _round_up((n + 1) // 2, 128))
    n_pad = _round_up(n, tn)
    if n_pad > n:
        # padded rows give garbage (but finite) probabilities; sliced off below
        x_all = jnp.pad(x_all, ((0, 0), (0, 0), (0, n_pad - n)))

    # batch-invariant softmax done once in the wrapper, shipped as a column
    lp_col = jax.nn.softmax(params["latent_logits"]).reshape(latent_dim, 1)
    lp_col = lp_col.astype(jnp.float32)

    # Feature-major weights: W^T (out, in); biases/out-weight as (H, 1) columns.
    weight_args = [
        params["w1_sa"].T.astype(jnp.bfloat16),                 # (H, S+A) bf16
        params["w1_lat"][:, :, None].astype(jnp.float32),       # (L, H, 1)
        params["b1"].reshape(size, 1),                          # (H, 1)
    ]
    for i in range(n_layer - 1):
        weight_args += [params[f"w{i + 2}"].T,                  # (H, H) = W^T
                        params[f"b{i + 2}"].reshape(size, 1)]   # (H, 1)
    weight_args.append(params["w_out"].reshape(size, 1))        # (H, 1)
    # NOTE: params["b_out"] is deliberately NOT shipped — it cancels in the
    # reward differences. Do not reuse this kernel for absolute rewards.

    def full_spec(arr):
        nd = arr.ndim
        return pl.BlockSpec(arr.shape, lambda i, _nd=nd: (0,) * _nd)

    grid = (n_pad // tn,)
    in_specs = ([pl.BlockSpec((4, sa, tn), lambda i: (0, 0, i)),
                 full_spec(lp_col)]
                + [full_spec(w) for w in weight_args])
    out_specs = (pl.BlockSpec((1, tn), lambda i: (0, i)),
                 pl.BlockSpec((latent_dim, tn), lambda i: (0, i)))

    m0 = 4 * n_pad
    m1 = latent_dim * m0
    flops = int(2 * m0 * sa * size
                + (n_layer - 1) * 2 * m1 * size * size
                + 2 * m1 * size
                + 8 * latent_dim * n_pad)
    transcendentals = int(n_layer * m1 * size + 2 * latent_dim * n_pad)
    bytes_accessed = int(x_all.size * 2
                         + lp_col.size * 4
                         + sum(int(w.size) for w in weight_args) * 4
                         + (1 + latent_dim) * n_pad * 4)

    prob_n_t, prob_nl_t = pl.pallas_call(
        _joint_likelihood_kernel,
        out_shape=(jax.ShapeDtypeStruct((1, n_pad), jnp.float32),
                   jax.ShapeDtypeStruct((latent_dim, n_pad), jnp.float32)),
        grid=grid,
        in_specs=in_specs,
        out_specs=out_specs,
        compiler_params=pltpu.CompilerParams(
            dimension_semantics=("parallel",)),
        cost_estimate=pl.CostEstimate(flops=flops,
                                      transcendentals=transcendentals,
                                      bytes_accessed=bytes_accessed),
    )(x_all, lp_col, *weight_args)

    # back to the PyTorch (n, ...) layout; padded columns sliced off here.
    prob_n = prob_n_t[:, :n].T       # (n, 1)
    prob_nl = prob_nl_t[:, :n].T     # (n, latent_dim)
    return prob_n, prob_nl


def reference_forward(states_l, a1_l, a2_l, states_r, a1_r, a2_r, params,
                      *, n_state, n_action, latent_dim, n_layer):
    """Pure-JAX reference mirroring the PyTorch forward."""
    def feats(s, a):
        return jnp.concatenate(
            [jax.nn.one_hot(s, n_state, dtype=jnp.float32),
             jax.nn.one_hot(a, n_action, dtype=jnp.float32)], axis=1)

    def mlp(x, u):
        h = x @ params["w1_sa"] + params["w1_lat"][u][None, :] + params["b1"]
        h = jnp.tanh(h)
        for i in range(n_layer - 1):
            h = jnp.tanh(h @ params[f"w{i + 2}"] + params[f"b{i + 2}"])
        return h @ params["w_out"] + params["b_out"]

    xl1, xl2 = feats(states_l, a1_l), feats(states_l, a2_l)
    xr1, xr2 = feats(states_r, a1_r), feats(states_r, a2_r)
    cols = []
    for u in range(latent_dim):
        pl_ = jax.nn.sigmoid(mlp(xl2, u) - mlp(xl1, u))
        pr_ = jax.nn.sigmoid(mlp(xr2, u) - mlp(xr1, u))
        cols.append(pl_ * pr_)
    prob_nl = jnp.concatenate(cols, axis=1)
    latent_probs = jax.nn.softmax(params["latent_logits"])
    prob_n = prob_nl @ latent_probs.reshape(-1, 1)
    return prob_n, prob_nl


if __name__ == "__main__":
    n_state, n_action, n_layer, size, latent_dim = 16, 8, 2, 32, 4
    n = 8

    key = jax.random.PRNGKey(0)
    kp, ks1, ka1, ka2, ks2, ka3, ka4 = jax.random.split(key, 7)
    params = init_params(kp, n_state, n_action, n_layer, size, latent_dim)

    states_l = jax.random.randint(ks1, (n,), 0, n_state)
    a1_l = jax.random.randint(ka1, (n,), 0, n_action)
    a2_l = jax.random.randint(ka2, (n,), 0, n_action)
    states_r = jax.random.randint(ks2, (n,), 0, n_state)
    a1_r = jax.random.randint(ka3, (n,), 0, n_action)
    a2_r = jax.random.randint(ka4, (n,), 0, n_action)

    fwd = functools.partial(multi_reward_forward,
                            n_state=n_state, n_action=n_action,
                            latent_dim=latent_dim, n_layer=n_layer)
    prob_n, prob_nl = jax.jit(fwd)(states_l, a1_l, a2_l, states_r, a1_r, a2_r,
                                   params)
    jax.block_until_ready((prob_n, prob_nl))

    ref_n, ref_nl = reference_forward(states_l, a1_l, a2_l, states_r, a1_r,
                                      a2_r, params, n_state=n_state,
                                      n_action=n_action, latent_dim=latent_dim,
                                      n_layer=n_layer)
    assert prob_n.shape == (n, 1) and prob_nl.shape == (n, latent_dim)
    assert jnp.allclose(prob_n, ref_n, atol=5e-3), "prob_n mismatch"
    assert jnp.allclose(prob_nl, ref_nl, atol=5e-3), "prob_nl mismatch"

    print("KERNEL_OK")
</pallas_src>

<mosaic_0001>
module attributes {stable_mosaic.version = 11 : i64} {
  func.func @_joint_likelihood_kernel(%arg0: i32, %arg1: memref<4x24x128xbf16, #tpu.memory_space<vmem>>, %arg2: memref<4x1xf32, #tpu.memory_space<vmem>>, %arg3: memref<32x24xbf16, #tpu.memory_space<vmem>>, %arg4: memref<4x32x1xf32, #tpu.memory_space<vmem>>, %arg5: memref<32x1xf32, #tpu.memory_space<vmem>>, %arg6: memref<32x32xf32, #tpu.memory_space<vmem>>, %arg7: memref<32x1xf32, #tpu.memory_space<vmem>>, %arg8: memref<32x1xf32, #tpu.memory_space<vmem>>, %arg9: memref<1x128xf32, #tpu.memory_space<vmem>>, %arg10: memref<4x128xf32, #tpu.memory_space<vmem>>) attributes {dimension_semantics = [#tpu.dimension_semantics<parallel>], iteration_bounds = array<i64: 1>, scalar_prefetch = 0 : i64, scratch_operands = 0 : i64, tpu.core_type = #tpu.core_type<tc>, window_params = [{transform_indices = @transform_0, window_bounds = array<i64: 4, 24, 128>}, {pipeline_mode = #tpu.pipeline_mode<synchronous>, transform_indices = @transform_1, window_bounds = array<i64: 4, 1>}, {pipeline_mode = #tpu.pipeline_mode<synchronous>, transform_indices = @transform_2, window_bounds = array<i64: 32, 24>}, {pipeline_mode = #tpu.pipeline_mode<synchronous>, transform_indices = @transform_3, window_bounds = array<i64: 4, 32, 1>}, {pipeline_mode = #tpu.pipeline_mode<synchronous>, transform_indices = @transform_4, window_bounds = array<i64: 32, 1>}, {pipeline_mode = #tpu.pipeline_mode<synchronous>, transform_indices = @transform_5, window_bounds = array<i64: 32, 32>}, {pipeline_mode = #tpu.pipeline_mode<synchronous>, transform_indices = @transform_6, window_bounds = array<i64: 32, 1>}, {pipeline_mode = #tpu.pipeline_mode<synchronous>, transform_indices = @transform_7, window_bounds = array<i64: 32, 1>}, {transform_indices = @transform_8, window_bounds = array<i64: 1, 128>}, {transform_indices = @transform_9, window_bounds = array<i64: 4, 128>}]} {
    %c0 = arith.constant 0 : index
    %c0_0 = arith.constant 0 : index
    %c0_1 = arith.constant 0 : index
    %0 = vector.load %arg1[%c0, %c0_0, %c0_1] : memref<4x24x128xbf16, #tpu.memory_space<vmem>>, vector<4x24x128xbf16>
    %c0_2 = arith.constant 0 : index
    %c0_3 = arith.constant 0 : index
    %1 = vector.load %arg3[%c0_2, %c0_3] : memref<32x24xbf16, #tpu.memory_space<vmem>>, vector<32x24xbf16>
    %2 = vector.shape_cast %1 : vector<32x24xbf16> to vector<1x32x24xbf16>
    %3 = vector.shape_cast %2 : vector<1x32x24xbf16> to vector<1x32x24xbf16>
    %4 = vector.broadcast %3 : vector<1x32x24xbf16> to vector<4x32x24xbf16>
    %cst = arith.constant dense<0.000000e+00> : vector<4x32x128xf32>
    %5 = tpu.matmul %4, %0, %cst {dimension_numbers = #tpu.dot_dimension_numbers<[2], [1], [1], [2], [0, 0, 0, 1, 1, 2], [0], [0]>} : vector<4x32x24xbf16>, vector<4x24x128xbf16>, vector<4x32x128xf32> -> vector<4x32x128xf32>
    %6 = vector.shape_cast %5 : vector<4x32x128xf32> to vector<4x1x32x128xf32>
    %c0_4 = arith.constant 0 : index
    %c0_5 = arith.constant 0 : index
    %c0_6 = arith.constant 0 : index
    %7 = vector.load %arg4[%c0_4, %c0_5, %c0_6] : memref<4x32x1xf32, #tpu.memory_space<vmem>>, vector<4x32x1xf32>
    %8 = vector.shape_cast %7 : vector<4x32x1xf32> to vector<1x4x32x1xf32>
    %9 = vector.broadcast %6 : vector<4x1x32x128xf32> to vector<4x4x32x128xf32>
    %10 = vector.broadcast %8 : vector<1x4x32x1xf32> to vector<4x4x32x128xf32>
    %11 = arith.addf %9, %10 : vector<4x4x32x128xf32>
    %c0_7 = arith.constant 0 : index
    %c0_8 = arith.constant 0 : index
    %12 = vector.load %arg5[%c0_7, %c0_8] : memref<32x1xf32, #tpu.memory_space<vmem>>, vector<32x1xf32>
    %13 = vector.shape_cast %12 : vector<32x1xf32> to vector<1x1x32x1xf32>
    %14 = vector.broadcast %13 : vector<1x1x32x1xf32> to vector<4x4x32x128xf32>
    %15 = arith.addf %11, %14 : vector<4x4x32x128xf32>
    %16 = math.tanh %15 : vector<4x4x32x128xf32>
    %17 = vector.shape_cast %16 : vector<4x4x32x128xf32> to vector<16x32x128xf32>
    %c0_9 = arith.constant 0 : index
    %c0_10 = arith.constant 0 : index
    %18 = vector.load %arg6[%c0_9, %c0_10] : memref<32x32xf32, #tpu.memory_space<vmem>>, vector<32x32xf32>
    %19 = vector.shape_cast %18 : vector<32x32xf32> to vector<1x32x32xf32>
    %20 = vector.shape_cast %19 : vector<1x32x32xf32> to vector<1x32x32xf32>
    %21 = vector.broadcast %20 : vector<1x32x32xf32> to vector<16x32x32xf32>
    %cst_11 = arith.constant dense<0.000000e+00> : vector<16x32x128xf32>
    %22 = tpu.matmul %21, %17, %cst_11 {dimension_numbers = #tpu.dot_dimension_numbers<[2], [1], [1], [2], [0, 0, 0, 1, 1, 2], [0], [0]>} : vector<16x32x32xf32>, vector<16x32x128xf32>, vector<16x32x128xf32> -> vector<16x32x128xf32>
    %c0_12 = arith.constant 0 : index
    %c0_13 = arith.constant 0 : index
    %23 = vector.load %arg7[%c0_12, %c0_13] : memref<32x1xf32, #tpu.memory_space<vmem>>, vector<32x1xf32>
    %24 = vector.shape_cast %23 : vector<32x1xf32> to vector<1x32x1xf32>
    %25 = vector.broadcast %24 : vector<1x32x1xf32> to vector<16x32x128xf32>
    %26 = arith.addf %22, %25 : vector<16x32x128xf32>
    %27 = math.tanh %26 : vector<16x32x128xf32>
    %c0_14 = arith.constant 0 : index
    %c0_15 = arith.constant 0 : index
    %28 = vector.load %arg8[%c0_14, %c0_15] : memref<32x1xf32, #tpu.memory_space<vmem>>, vector<32x1xf32>
    %29 = vector.extract_strided_slice %27 {offsets = [4, 0, 0], sizes = [4, 32, 128], strides = [1, 1, 1]} : vector<16x32x128xf32> to vector<4x32x128xf32>
    %30 = vector.shape_cast %28 : vector<32x1xf32> to vector<1x32x1xf32>
    %31 = vector.broadcast %30 : vector<1x32x1xf32> to vector<4x32x128xf32>
    %32 = arith.mulf %29, %31 : vector<4x32x128xf32>
    %cst_16 = arith.constant dense<0.000000e+00> : vector<4x128xf32>
    %33 = vector.multi_reduction <add>, %32, %cst_16 [1] : vector<4x32x128xf32> to vector<4x128xf32>
    %34 = vector.extract_strided_slice %27 {offsets = [0, 0, 0], sizes = [4, 32, 128], strides = [1, 1, 1]} : vector<16x32x128xf32> to vector<4x32x128xf32>
    %35 = vector.shape_cast %28 : vector<32x1xf32> to vector<1x32x1xf32>
    %36 = vector.broadcast %35 : vector<1x32x1xf32> to vector<4x32x128xf32>
    %37 = arith.mulf %34, %36 : vector<4x32x128xf32>
    %cst_17 = arith.constant dense<0.000000e+00> : vector<4x128xf32>
    %38 = vector.multi_reduction <add>, %37, %cst_17 [1] : vector<4x32x128xf32> to vector<4x128xf32>
    %39 = arith.subf %33, %38 : vector<4x128xf32>
    %40 = arith.negf %39 : vector<4x128xf32>
    %41 = math.exp %40 : vector<4x128xf32>
    %cst_18 = arith.constant 1.000000e+00 : f32
    %42 = vector.broadcast %cst_18 : f32 to vector<4x128xf32>
    %43 = arith.addf %42, %41 : vector<4x128xf32>
    %44 = arith.divf %42, %43 : vector<4x128xf32>
    %45 = vector.extract_strided_slice %27 {offsets = [12, 0, 0], sizes = [4, 32, 128], strides = [1, 1, 1]} : vector<16x32x128xf32> to vector<4x32x128xf32>
    %46 = vector.shape_cast %28 : vector<32x1xf32> to vector<1x32x1xf32>
    %47 = vector.broadcast %46 : vector<1x32x1xf32> to vector<4x32x128xf32>
    %48 = arith.mulf %45, %47 : vector<4x32x128xf32>
    %cst_19 = arith.constant dense<0.000000e+00> : vector<4x128xf32>
    %49 = vector.multi_reduction <add>, %48, %cst_19 [1] : vector<4x32x128xf32> to vector<4x128xf32>
    %50 = vector.extract_strided_slice %27 {offsets = [8, 0, 0], sizes = [4, 32, 128], strides = [1, 1, 1]} : vector<16x32x128xf32> to vector<4x32x128xf32>
    %51 = vector.shape_cast %28 : vector<32x1xf32> to vector<1x32x1xf32>
    %52 = vector.broadcast %51 : vector<1x32x1xf32> to vector<4x32x128xf32>
    %53 = arith.mulf %50, %52 : vector<4x32x128xf32>
    %cst_20 = arith.constant dense<0.000000e+00> : vector<4x128xf32>
    %54 = vector.multi_reduction <add>, %53, %cst_20 [1] : vector<4x32x128xf32> to vector<4x128xf32>
    %55 = arith.subf %49, %54 : vector<4x128xf32>
    %56 = arith.negf %55 : vector<4x128xf32>
    %57 = math.exp %56 : vector<4x128xf32>
    %cst_21 = arith.constant 1.000000e+00 : f32
    %58 = vector.broadcast %cst_21 : f32 to vector<4x128xf32>
    %59 = arith.addf %58, %57 : vector<4x128xf32>
    %60 = arith.divf %58, %59 : vector<4x128xf32>
    %61 = arith.mulf %44, %60 : vector<4x128xf32>
    %c0_22 = arith.constant 0 : index
    %c0_23 = arith.constant 0 : index
    %62 = vector.load %arg10[%c0_22, %c0_23] : memref<4x128xf32, #tpu.memory_space<vmem>>, vector<4x128xf32>
    tpu.vector_store %arg10[%c0_22, %c0_23], %61 {strides = array<i32>} : memref<4x128xf32, #tpu.memory_space<vmem>>, vector<4x128xf32>,
    %c0_24 = arith.constant 0 : index
    %c0_25 = arith.constant 0 : index
    %63 = vector.load %arg2[%c0_24, %c0_25] : memref<4x1xf32, #tpu.memory_space<vmem>>, vector<4x1xf32>
    %64 = vector.broadcast %63 : vector<4x1xf32> to vector<4x128xf32>
    %65 = arith.mulf %61, %64 : vector<4x128xf32>
    %cst_26 = arith.constant dense<0.000000e+00> : vector<128xf32>
    %66 = vector.multi_reduction <add>, %65, %cst_26 [0] : vector<4x128xf32> to vector<128xf32>
    %67 = vector.shape_cast %66 : vector<128xf32> to vector<1x128xf32>
    %c0_27 = arith.constant 0 : index
    %c0_28 = arith.constant 0 : index
    %68 = vector.load %arg9[%c0_27, %c0_28] : memref<1x128xf32, #tpu.memory_space<vmem>>, vector<1x128xf32>
    tpu.vector_store %arg9[%c0_27, %c0_28], %67 {strides = array<i32>} : memref<1x128xf32, #tpu.memory_space<vmem>>, vector<1x128xf32>,
    return
  }
  func.func @transform_0(%arg0: i32) -> (i32, i32, i32) {
    %c0_i32 = arith.constant 0 : i32
    %c0_i32_0 = arith.constant 0 : i32
    %c0_i32_1 = arith.constant 0 : i32
    return %c0_i32, %c0_i32_0, %arg0 : i32, i32, i32
  }
  func.func @transform_1(%arg0: i32) -> (i32, i32) {
    %c0_i32 = arith.constant 0 : i32
    %c0_i32_0 = arith.constant 0 : i32
    %c0_i32_1 = arith.constant 0 : i32
    return %c0_i32, %c0_i32_0 : i32, i32
  }
  func.func @transform_2(%arg0: i32) -> (i32, i32) {
    %c0_i32 = arith.constant 0 : i32
    %c0_i32_0 = arith.constant 0 : i32
    %c0_i32_1 = arith.constant 0 : i32
    return %c0_i32, %c0_i32_0 : i32, i32
  }
  func.func @transform_3(%arg0: i32) -> (i32, i32, i32) {
    %c0_i32 = arith.constant 0 : i32
    %c0_i32_0 = arith.constant 0 : i32
    %c0_i32_1 = arith.constant 0 : i32
    %c0_i32_2 = arith.constant 0 : i32
    return %c0_i32, %c0_i32_0, %c0_i32_1 : i32, i32, i32
  }
  func.func @transform_4(%arg0: i32) -> (i32, i32) {
    %c0_i32 = arith.constant 0 : i32
    %c0_i32_0 = arith.constant 0 : i32
    %c0_i32_1 = arith.constant 0 : i32
    return %c0_i32, %c0_i32_0 : i32, i32
  }
  func.func @transform_5(%arg0: i32) -> (i32, i32) {
    %c0_i32 = arith.constant 0 : i32
    %c0_i32_0 = arith.constant 0 : i32
    %c0_i32_1 = arith.constant 0 : i32
    return %c0_i32, %c0_i32_0 : i32, i32
  }
  func.func @transform_6(%arg0: i32) -> (i32, i32) {
    %c0_i32 = arith.constant 0 : i32
    %c0_i32_0 = arith.constant 0 : i32
    %c0_i32_1 = arith.constant 0 : i32
    return %c0_i32, %c0_i32_0 : i32, i32
  }
  func.func @transform_7(%arg0: i32) -> (i32, i32) {
    %c0_i32 = arith.constant 0 : i32
    %c0_i32_0 = arith.constant 0 : i32
    %c0_i32_1 = arith.constant 0 : i32
    return %c0_i32, %c0_i32_0 : i32, i32
  }
  func.func @transform_8(%arg0: i32) -> (i32, i32) {
    %c0_i32 = arith.constant 0 : i32
    %c0_i32_0 = arith.constant 0 : i32
    return %c0_i32, %arg0 : i32, i32
  }
  func.func @transform_9(%arg0: i32) -> (i32, i32) {
    %c0_i32 = arith.constant 0 : i32
    %c0_i32_0 = arith.constant 0 : i32
    return %c0_i32, %arg0 : i32, i32
  }
}

</mosaic_0001>

<llo_original>
// kernel: multi_reward_forward.1
$region0: #{multi_reward_forward.1}
  #allocation0 [shape = 'u32[]', space=smem, size = 0x4, offset = 0x4, fixed_abs, tag = 'smem constant byte address 0x4 - core index']
  #allocation1 [shape = 'u32[144,128]{1,0:T(1,128)}', space=vmem, size = 0x12000, scoped, tag = 'internal scratch']
  %s0 = inlined_call_operand.vmem [shape: bf16[4,24,128], index: 0, kind: input, shape index: {}]
  %s1 = inlined_call_operand.vmem [shape: f32[4,1], index: 1, kind: input, shape index: {}]
  %s2 = inlined_call_operand.vmem [shape: bf16[32,24], index: 2, kind: input, shape index: {}]
  %s3 = inlined_call_operand.vmem [shape: f32[4,32,1], index: 3, kind: input, shape index: {}]
  %s4 = inlined_call_operand.vmem [shape: f32[32,1], index: 4, kind: input, shape index: {}]
  %s5 = inlined_call_operand.vmem [shape: f32[32,32], index: 5, kind: input, shape index: {}]
  %s6 = inlined_call_operand.vmem [shape: f32[32,1], index: 6, kind: input, shape index: {}]
  %s7 = inlined_call_operand.vmem [shape: f32[32,1], index: 7, kind: input, shape index: {}]
  %s8 = inlined_call_operand.vmem [shape: f32[1,128], index: 8, kind: output, shape index: {0}]
  %s9 = inlined_call_operand.vmem [shape: f32[4,128], index: 9, kind: output, shape index: {1}]
  %10 = xla_tuple %s8, %s9
  %s11 = sld [smem:[#allocation0]]
  $region50: #{multi_reward_forward.1} parent=0
    _
  %s13 = ssub.s32 1, %s11
  %s14 = scalar_select 0, %s13, %s11
  // Predicated region
  $region2: #{multi_reward_forward.1} parent=0 // pred_check
    _
  $region3: #{multi_reward_forward.1} parent=0 // pred_check_branch
    %16 = sbr.rel (0) target = $region5
  $region4: #{multi_reward_forward.1} parent=0 // pred_region
    _
  $region5: #{multi_reward_forward.1} parent=0 // pred_fallthru
    _
  // Predicated region
  $region6: #{multi_reward_forward.1} parent=0 // pred_check
    _
  $region7: #{multi_reward_forward.1} parent=0 // pred_check_branch
    %18 = sbr.rel (0) target = $region9
  $region8: #{multi_reward_forward.1} parent=0 // pred_region
    _
  $region9: #{multi_reward_forward.1} parent=0 // pred_fallthru
    _
  // Predicated region
  $region10: #{multi_reward_forward.1} parent=0 // pred_check
    _
  $region11: #{multi_reward_forward.1} parent=0 // pred_check_branch
    %20 = sbr.rel (0) target = $region13
  $region12: #{multi_reward_forward.1} parent=0 // pred_region
    _
  $region13: #{multi_reward_forward.1} parent=0 // pred_fallthru
    _
  // Predicated region
  $region14: #{multi_reward_forward.1} parent=0 // pred_check
    _
  $region15: #{multi_reward_forward.1} parent=0 // pred_check_branch
    %22 = sbr.rel (0) target = $region17
  $region16: #{multi_reward_forward.1} parent=0 // pred_region
    _
  $region17: #{multi_reward_forward.1} parent=0 // pred_fallthru
    _
  // Predicated region
  $region18: #{multi_reward_forward.1} parent=0 // pred_check
    _
  $region19: #{multi_reward_forward.1} parent=0 // pred_check_branch
    %24 = sbr.rel (0) target = $region21
  $region20: #{multi_reward_forward.1} parent=0 // pred_region
    _
  $region21: #{multi_reward_forward.1} parent=0 // pred_fallthru
    _
  // Predicated region
  $region22: #{multi_reward_forward.1} parent=0 // pred_check
    _
  $region23: #{multi_reward_forward.1} parent=0 // pred_check_branch
    %26 = sbr.rel (0) target = $region25
  $region24: #{multi_reward_forward.1} parent=0 // pred_region
    _
  $region25: #{multi_reward_forward.1} parent=0 // pred_fallthru
    _
  // Predicated region
  $region26: #{multi_reward_forward.1} parent=0 // pred_check
    _
  $region27: #{multi_reward_forward.1} parent=0 // pred_check_branch
    %28 = sbr.rel (0) target = $region29
  $region28: #{multi_reward_forward.1} parent=0 // pred_region
    _
  $region29: #{multi_reward_forward.1} parent=0 // pred_fallthru
    _
  // Predicated region
  $region30: #{multi_reward_forward.1} parent=0 // pred_check
    _
  $region31: #{multi_reward_forward.1} parent=0 // pred_check_branch
    %30 = sbr.rel (0) target = $region33
  $region32: #{multi_reward_forward.1} parent=0 // pred_region
    _
  $region33: #{multi_reward_forward.1} parent=0 // pred_fallthru
    _
  %v32 = vld [vmem:[%s0] sm:$0xf]
  %v33 = vld [vmem:[%s0 + $0x4] sm:$0xf]
  %v34 = vld [vmem:[%s0 + $0x8] sm:$0xf]
  %v35 = vld [vmem:[%s0 + $0xc] sm:$0xf]
  %v36 = vld [vmem:[%s0 + $0x10] sm:$0xf]
  %v37 = vld [vmem:[%s0 + $0x14] sm:$0xf]
  %v38 = vld [vmem:[%s0 + $0x18] sm:$0xf]
  %v39 = vld [vmem:[%s0 + $0x1c] sm:$0xf]
  %v40 = vld [vmem:[%s0 + $0x20] sm:$0xf]
  %v41 = vld [vmem:[%s0 + $0x24] sm:$0xf]
  %v42 = vld [vmem:[%s0 + $0x28] sm:$0xf]
  %v43 = vld [vmem:[%s0 + $0x2c] sm:$0xf]
  %v44 = vld [vmem:[%s2] sm:$0xf]
  %v45 = vld [vmem:[%s2 + $0x4] sm:$0xf]
  %v46 = vld [vmem:[%s2 + $0x8] sm:$0xf]
  %v47 = vld [vmem:[%s2 + $0xc] sm:$0xf]
  %v52 = vunpack.c.l.b16 %v44
  %v53 = vunpack.c.l.b16 %v45
  %v54 = vunpack.c.l.b16 %v46
  %v55 = vunpack.c.l.b16 %v47
  %v56 = vpack.c.b16 %v53, %v52
  %v57 = vpack.c.b16 %v55, %v54
  %v61 = vunpack.c.l.b16 %v32
  %v62 = vunpack.c.l.b16 %v33
  %v63 = vunpack.c.l.b16 %v34
  %v64 = vpack.c.b16 %v62, %v61
  %v65 = vpack.c.b16 %v63, %v63
  %vm67 = vcmask 195584
  %v69 = vsel %vm67, %v56, 0
  %v72 = vsel %vm67, %v57, 0
  %vm74 = vcmask 1043456
  %v76 = vsel %vm74, %v65, 0
  %78 = vmatprep.subr.bf16.mxu0 0
  %79 = vmatpush1.bf16.msra.mxu0 %v64
  %80 = vmatprep.subr.bf16.mxu0 0
  %81 = vmatpush1.bf16.msra.mxu0 %v76
  %82 = vmatprep.subr.bf16.mxu0 0
  %83 = vmatpush1.bf16.msra.mxu0 0
  %84 = vmatprep.subr.bf16.mxu0 0
  %85 = vmatpush1.bf16.msra.mxu0 0
  %86 = vmatprep.subr.bf16.mxu0 0
  %87 = vmatpush1.bf16.msra.mxu0 0
  %88 = vmatprep.subr.bf16.mxu0 0
  %89 = vmatpush1.bf16.msra.mxu0 0
  %90 = vmatprep.subr.bf16.mxu0 0
  %91 = vmatpush1.bf16.msra.mxu0 0
  %92 = vmatprep.subr.bf16.mxu0 0
  %93 = vmatpush1.bf16.msra.mxu0 0
  %94 = vmatprep.subr.bf16.mxu0 0
  %95 = vmatpush1.bf16.msra.mxu0 0
  %96 = vmatprep.subr.bf16.mxu0 0
  %97 = vmatpush1.bf16.msra.mxu0 0
  %98 = vmatprep.subr.bf16.mxu0 0
  %99 = vmatpush1.bf16.msra.mxu0 0
  %100 = vmatprep.subr.bf16.mxu0 0
  %101 = vmatpush1.bf16.msra.mxu0 0
  %102 = vmatprep.subr.bf16.mxu0 0
  %103 = vmatpush1.bf16.msra.mxu0 0
  %104 = vmatprep.subr.bf16.mxu0 0
  %105 = vmatpush1.bf16.msra.mxu0 0
  %106 = vmatprep.subr.bf16.mxu0 0
  %107 = vmatpush1.bf16.msra.mxu0 0
  %108 = vmatprep.subr.bf16.mxu0 0
  %109 = vmatpush1.bf16.msra.mxu0 0
  %110 = vmatprep.mubr.bf16.mxu0 0
  %111 = vmatmul.mubr.bf16.gmra.mrb[0].mxu0 %v69
  %v112 = vpop.f32.mrb[0].mxu0
  %v113 = vadd.f32 0.0, %v112
  %v114 = vpop.f32.mrb[0].mxu0
  %v115 = vpop.f32.mrb[0].mxu0
  %v116 = vadd.f32 0.0, %v115
  %v117 = vpop.f32.mrb[0].mxu0
  %118 = vmatprep.mubr.bf16.mxu0 0
  %119 = vmatmul.mubr.bf16.gmra.mrb[0].mxu0 %v72
  %v120 = vpop.f32.mrb[0].mxu0
  %v121 = vadd.f32 0.0, %v120
  %v122 = vpop.f32.mrb[0].mxu0
  %v123 = vpop.f32.mrb[0].mxu0
  %v124 = vadd.f32 0.0, %v123
  %v125 = vpop.f32.mrb[0].mxu0
  %126 = vdwg.mxu0
  %v130 = vunpack.c.l.b16 %v35
  %v131 = vunpack.c.l.b16 %v36
  %v132 = vunpack.c.l.b16 %v37
  %v133 = vpack.c.b16 %v131, %v130
  %v134 = vpack.c.b16 %v132, %v132
  %v137 = vsel %vm74, %v134, 0
  %139 = vmatprep.subr.bf16.mxu0 0
  %140 = vmatpush1.bf16.msra.mxu0 %v133
  %141 = vmatprep.subr.bf16.mxu0 0
  %142 = vmatpush1.bf16.msra.mxu0 %v137
  %143 = vmatprep.subr.bf16.mxu0 0
  %144 = vmatpush1.bf16.msra.mxu0 0
  %145 = vmatprep.subr.bf16.mxu0 0
  %146 = vmatpush1.bf16.msra.mxu0 0
  %147 = vmatprep.subr.bf16.mxu0 0
  %148 = vmatpush1.bf16.msra.mxu0 0
  %149 = vmatprep.subr.bf16.mxu0 0
  %150 = vmatpush1.bf16.msra.mxu0 0
  %151 = vmatprep.subr.bf16.mxu0 0
  %152 = vmatpush1.bf16.msra.mxu0 0
  %153 = vmatprep.subr.bf16.mxu0 0
  %154 = vmatpush1.bf16.msra.mxu0 0
  %155 = vmatprep.subr.bf16.mxu0 0
  %156 = vmatpush1.bf16.msra.mxu0 0
  %157 = vmatprep.subr.bf16.mxu0 0
  %158 = vmatpush1.bf16.msra.mxu0 0
  %159 = vmatprep.subr.bf16.mxu0 0
  %160 = vmatpush1.bf16.msra.mxu0 0
  %161 = vmatprep.subr.bf16.mxu0 0
  %162 = vmatpush1.bf16.msra.mxu0 0
  %163 = vmatprep.subr.bf16.mxu0 0
  %164 = vmatpush1.bf16.msra.mxu0 0
  %165 = vmatprep.subr.bf16.mxu0 0
  %166 = vmatpush1.bf16.msra.mxu0 0
  %167 = vmatprep.subr.bf16.mxu0 0
  %168 = vmatpush1.bf16.msra.mxu0 0
  %169 = vmatprep.subr.bf16.mxu0 0
  %170 = vmatpush1.bf16.msra.mxu0 0
  %171 = vmatprep.mubr.bf16.mxu0 0
  %172 = vmatmul.mubr.bf16.gmra.mrb[0].mxu0 %v69
  %v173 = vpop.f32.mrb[0].mxu0
  %v174 = vadd.f32 0.0, %v173
  %v175 = vpop.f32.mrb[0].mxu0
  %v176 = vpop.f32.mrb[0].mxu0
  %v177 = vadd.f32 0.0, %v176
  %v178 = vpop.f32.mrb[0].mxu0
  %179 = vmatprep.mubr.bf16.mxu0 0
  %180 = vmatmul.mubr.bf16.gmra.mrb[0].mxu0 %v72
  %v181 = vpop.f32.mrb[0].mxu0
  %v182 = vadd.f32 0.0, %v181
  %v183 = vpop.f32.mrb[0].mxu0
  %v184 = vpop.f32.mrb[0].mxu0
  %v185 = vadd.f32 0.0, %v184
  %v186 = vpop.f32.mrb[0].mxu0
  %187 = vdwg.mxu0
  %v191 = vunpack.c.l.b16 %v38
  %v192 = vunpack.c.l.b16 %v39
  %v193 = vunpack.c.l.b16 %v40
  %v194 = vpack.c.b16 %v192, %v191
  %v195 = vpack.c.b16 %v193, %v193
  %v198 = vsel %vm74, %v195, 0
  %200 = vmatprep.subr.bf16.mxu0 0
  %201 = vmatpush1.bf16.msra.mxu0 %v194
  %202 = vmatprep.subr.bf16.mxu0 0
  %203 = vmatpush1.bf16.msra.mxu0 %v198
  %204 = vmatprep.subr.bf16.mxu0 0
  %205 = vmatpush1.bf16.msra.mxu0 0
  %206 = vmatprep.subr.bf16.mxu0 0
  %207 = vmatpush1.bf16.msra.mxu0 0
  %208 = vmatprep.subr.bf16.mxu0 0
  %209 = vmatpush1.bf16.msra.mxu0 0
  %210 = vmatprep.subr.bf16.mxu0 0
  %211 = vmatpush1.bf16.msra.mxu0 0
  %212 = vmatprep.subr.bf16.mxu0 0
  %213 = vmatpush1.bf16.msra.mxu0 0
  %214 = vmatprep.subr.bf16.mxu0 0
  %215 = vmatpush1.bf16.msra.mxu0 0
  %216 = vmatprep.subr.bf16.mxu0 0
  %217 = vmatpush1.bf16.msra.mxu0 0
  %218 = vmatprep.subr.bf16.mxu0 0
  %219 = vmatpush1.bf16.msra.mxu0 0
  %220 = vmatprep.subr.bf16.mxu0 0
  %221 = vmatpush1.bf16.msra.mxu0 0
  %222 = vmatprep.subr.bf16.mxu0 0
  %223 = vmatpush1.bf16.msra.mxu0 0
  %224 = vmatprep.subr.bf16.mxu0 0
  %225 = vmatpush1.bf16.msra.mxu0 0
  %226 = vmatprep.subr.bf16.mxu0 0
  %227 = vmatpush1.bf16.msra.mxu0 0
  %228 = vmatprep.subr.bf16.mxu0 0
  %229 = vmatpush1.bf16.msra.mxu0 0
  %230 = vmatprep.subr.bf16.mxu0 0
  %231 = vmatpush1.bf16.msra.mxu0 0
  %232 = vmatprep.mubr.bf16.mxu0 0
  %233 = vmatmul.mubr.bf16.gmra.mrb[0].mxu0 %v69
  %v234 = vpop.f32.mrb[0].mxu0
  %v235 = vadd.f32 0.0, %v234
  %v236 = vpop.f32.mrb[0].mxu0
  %v237 = vpop.f32.mrb[0].mxu0
  %v238 = vadd.f32 0.0, %v237
  %v239 = vpop.f32.mrb[0].mxu0
  %240 = vmatprep.mubr.bf16.mxu0 0
  %241 = vmatmul.mubr.bf16.gmra.mrb[0].mxu0 %v72
  %v242 = vpop.f32.mrb[0].mxu0
  %v243 = vadd.f32 0.0, %v242
  %v244 = vpop.f32.mrb[0].mxu0
  %v245 = vpop.f32.mrb[0].mxu0
  %v246 = vadd.f32 0.0, %v245
  %v247 = vpop.f32.mrb[0].mxu0
  %248 = vdwg.mxu0
  %v252 = vunpack.c.l.b16 %v41
  %v253 = vunpack.c.l.b16 %v42
  %v254 = vunpack.c.l.b16 %v43
  %v255 = vpack.c.b16 %v253, %v252
  %v256 = vpack.c.b16 %v254, %v254
  %v259 = vsel %vm74, %v256, 0
  %261 = vmatprep.subr.bf16.mxu0 0
  %262 = vmatpush1.bf16.msra.mxu0 %v255
  %263 = vmatprep.subr.bf16.mxu0 0
  %264 = vmatpush1.bf16.msra.mxu0 %v259
  %265 = vmatprep.subr.bf16.mxu0 0
  %266 = vmatpush1.bf16.msra.mxu0 0
  %267 = vmatprep.subr.bf16.mxu0 0
  %268 = vmatpush1.bf16.msra.mxu0 0
  %269 = vmatprep.subr.bf16.mxu0 0
  %270 = vmatpush1.bf16.msra.mxu0 0
  %271 = vmatprep.subr.bf16.mxu0 0
  %272 = vmatpush1.bf16.msra.mxu0 0
  %273 = vmatprep.subr.bf16.mxu0 0
  %274 = vmatpush1.bf16.msra.mxu0 0
  %275 = vmatprep.subr.bf16.mxu0 0
  %276 = vmatpush1.bf16.msra.mxu0 0
  %277 = vmatprep.subr.bf16.mxu0 0
  %278 = vmatpush1.bf16.msra.mxu0 0
  %279 = vmatprep.subr.bf16.mxu0 0
  %280 = vmatpush1.bf16.msra.mxu0 0
  %281 = vmatprep.subr.bf16.mxu0 0
  %282 = vmatpush1.bf16.msra.mxu0 0
  %283 = vmatprep.subr.bf16.mxu0 0
  %284 = vmatpush1.bf16.msra.mxu0 0
  %285 = vmatprep.subr.bf16.mxu0 0
  %286 = vmatpush1.bf16.msra.mxu0 0
  %287 = vmatprep.subr.bf16.mxu0 0
  %288 = vmatpush1.bf16.msra.mxu0 0
  %289 = vmatprep.subr.bf16.mxu0 0
  %290 = vmatpush1.bf16.msra.mxu0 0
  %291 = vmatprep.subr.bf16.mxu0 0
  %292 = vmatpush1.bf16.msra.mxu0 0
  %293 = vmatprep.mubr.bf16.mxu0 0
  %294 = vmatmul.mubr.bf16.gmra.mrb[0].mxu0 %v69
  %v295 = vpop.f32.mrb[0].mxu0
  %v296 = vadd.f32 0.0, %v295
  %v297 = vpop.f32.mrb[0].mxu0
  %v298 = vpop.f32.mrb[0].mxu0
  %v299 = vadd.f32 0.0, %v298
  %v300 = vpop.f32.mrb[0].mxu0
  %301 = vmatprep.mubr.bf16.mxu0 0
  %302 = vmatmul.mubr.bf16.gmra.mrb[0].mxu0 %v72
  %v303 = vpop.f32.mrb[0].mxu0
  %v304 = vadd.f32 0.0, %v303
  %v305 = vpop.f32.mrb[0].mxu0
  %v306 = vpop.f32.mrb[0].mxu0
  %v307 = vadd.f32 0.0, %v306
  %v308 = vpop.f32.mrb[0].mxu0
  %309 = vdwg.mxu0
  %v310 = vld [vmem:[%s3] sm:$0xff]
  %v311 = vld [vmem:[%s3 + $0x8] sm:$0xff]
  %v312 = vld [vmem:[%s3 + $0x10] sm:$0xff]
  %v313 = vld [vmem:[%s3 + $0x18] sm:$0xff]
  %v314 = vld [vmem:[%s3 + $0x20] sm:$0xff]
  %v315 = vld [vmem:[%s3 + $0x28] sm:$0xff]
  %v316 = vld [vmem:[%s3 + $0x30] sm:$0xff]
  %v317 = vld [vmem:[%s3 + $0x38] sm:$0xff]
  %v318 = vld [vmem:[%s3 + $0x40] sm:$0xff]
  %v319 = vld [vmem:[%s3 + $0x48] sm:$0xff]
  %v320 = vld [vmem:[%s3 + $0x50] sm:$0xff]
  %v321 = vld [vmem:[%s3 + $0x58] sm:$0xff]
  %v322 = vld [vmem:[%s3 + $0x60] sm:$0xff]
  %v323 = vld [vmem:[%s3 + $0x68] sm:$0xff]
  %v324 = vld [vmem:[%s3 + $0x70] sm:$0xff]
  %v325 = vld [vmem:[%s3 + $0x78] sm:$0xff]
  %327 = vset.pattern.permute.xlu0 0
  %328 = vperm.xlu0 %327, %v310
  %v329 = vpop.permute.xlu0 %328
  %332 = vset.pattern.permute.xlu0 0
  %333 = vperm.xlu0 %332, %v311
  %v334 = vpop.permute.xlu0 %333
  %337 = vset.pattern.permute.xlu0 0
  %338 = vperm.xlu0 %337, %v312
  %v339 = vpop.permute.xlu0 %338
  %342 = vset.pattern.permute.xlu0 0
  %343 = vperm.xlu0 %342, %v313
  %v344 = vpop.permute.xlu0 %343
  %347 = vset.pattern.permute.xlu0 0
  %348 = vperm.xlu0 %347, %v314
  %v349 = vpop.permute.xlu0 %348
  %352 = vset.pattern.permute.xlu0 0
  %353 = vperm.xlu0 %352, %v315
  %v354 = vpop.permute.xlu0 %353
  %357 = vset.pattern.permute.xlu0 0
  %358 = vperm.xlu0 %357, %v316
  %v359 = vpop.permute.xlu0 %358
  %362 = vset.pattern.permute.xlu0 0
  %363 = vperm.xlu0 %362, %v317
  %v364 = vpop.permute.xlu0 %363
  %367 = vset.pattern.permute.xlu0 0
  %368 = vperm.xlu0 %367, %v318
  %v369 = vpop.permute.xlu0 %368
  %372 = vset.pattern.permute.xlu0 0
  %373 = vperm.xlu0 %372, %v319
  %v374 = vpop.permute.xlu0 %373
  %377 = vset.pattern.permute.xlu0 0
  %378 = vperm.xlu0 %377, %v320
  %v379 = vpop.permute.xlu0 %378
  %382 = vset.pattern.permute.xlu0 0
  %383 = vperm.xlu0 %382, %v321
  %v384 = vpop.permute.xlu0 %383
  %387 = vset.pattern.permute.xlu0 0
  %388 = vperm.xlu0 %387, %v322
  %v389 = vpop.permute.xlu0 %388
  %392 = vset.pattern.permute.xlu0 0
  %393 = vperm.xlu0 %392, %v323
  %v394 = vpop.permute.xlu0 %393
  %397 = vset.pattern.permute.xlu0 0
  %398 = vperm.xlu0 %397, %v324
  %v399 = vpop.permute.xlu0 %398
  %402 = vset.pattern.permute.xlu0 0
  %403 = vperm.xlu0 %402, %v325
  %v404 = vpop.permute.xlu0 %403
  %v406 = vadd.f32 %v113, %v329
  %v407 = vadd.f32 %v116, %v334
  %v408 = vadd.f32 %v121, %v339
  %v409 = vadd.f32 %v124, %v344
  %v410 = vadd.f32 %v113, %v349
  %v411 = vadd.f32 %v116, %v354
  %v412 = vadd.f32 %v121, %v359
  %v413 = vadd.f32 %v124, %v364
  %v414 = vadd.f32 %v113, %v369
  %v415 = vadd.f32 %v116, %v374
  %v416 = vadd.f32 %v121, %v379
  %v417 = vadd.f32 %v124, %v384
  %v418 = vadd.f32 %v113, %v389
  %v419 = vadd.f32 %v116, %v394
  %v420 = vadd.f32 %v121, %v399
  %v421 = vadd.f32 %v124, %v404
  %v422 = vadd.f32 %v174, %v329
  %v423 = vadd.f32 %v177, %v334
  %v424 = vadd.f32 %v182, %v339
  %v425 = vadd.f32 %v185, %v344
  %v426 = vadd.f32 %v174, %v349
  %v427 = vadd.f32 %v177, %v354
  %v428 = vadd.f32 %v182, %v359
  %v429 = vadd.f32 %v185, %v364
  %v430 = vadd.f32 %v174, %v369
  %v431 = vadd.f32 %v177, %v374
  %v432 = vadd.f32 %v182, %v379
  %v433 = vadd.f32 %v185, %v384
  %v434 = vadd.f32 %v174, %v389
  %v435 = vadd.f32 %v177, %v394
  %v436 = vadd.f32 %v182, %v399
  %v437 = vadd.f32 %v185, %v404
  %v438 = vadd.f32 %v235, %v329
  %v439 = vadd.f32 %v238, %v334
  %v440 = vadd.f32 %v243, %v339
  %v441 = vadd.f32 %v246, %v344
  %v442 = vadd.f32 %v235, %v349
  %v443 = vadd.f32 %v238, %v354
  %v444 = vadd.f32 %v243, %v359
  %v445 = vadd.f32 %v246, %v364
  %v446 = vadd.f32 %v235, %v369
  %v447 = vadd.f32 %v238, %v374
  %v448 = vadd.f32 %v243, %v379
  %v449 = vadd.f32 %v246, %v384
  %v450 = vadd.f32 %v235, %v389
  %v451 = vadd.f32 %v238, %v394
  %v452 = vadd.f32 %v243, %v399
  %v453 = vadd.f32 %v246, %v404
  %v454 = vadd.f32 %v296, %v329
  %v455 = vadd.f32 %v299, %v334
  %v456 = vadd.f32 %v304, %v339
  %v457 = vadd.f32 %v307, %v344
  %v458 = vadd.f32 %v296, %v349
  %v459 = vadd.f32 %v299, %v354
  %v460 = vadd.f32 %v304, %v359
  %v461 = vadd.f32 %v307, %v364
  %v462 = vadd.f32 %v296, %v369
  %v463 = vadd.f32 %v299, %v374
  %v464 = vadd.f32 %v304, %v379
  %v465 = vadd.f32 %v307, %v384
  %v466 = vadd.f32 %v296, %v389
  %v467 = vadd.f32 %v299, %v394
  %v468 = vadd.f32 %v304, %v399
  %v469 = vadd.f32 %v307, %v404
  %v470 = vld [vmem:[%s4] sm:$0xff]
  %v471 = vld [vmem:[%s4 + $0x8] sm:$0xff]
  %v472 = vld [vmem:[%s4 + $0x10] sm:$0xff]
  %v473 = vld [vmem:[%s4 + $0x18] sm:$0xff]
  %475 = vset.pattern.permute.xlu0 0
  %476 = vperm.xlu0 %475, %v470
  %v477 = vpop.permute.xlu0 %476
  %480 = vset.pattern.permute.xlu0 0
  %481 = vperm.xlu0 %480, %v471
  %v482 = vpop.permute.xlu0 %481
  %485 = vset.pattern.permute.xlu0 0
  %486 = vperm.xlu0 %485, %v472
  %v487 = vpop.permute.xlu0 %486
  %490 = vset.pattern.permute.xlu0 0
  %491 = vperm.xlu0 %490, %v473
  %v492 = vpop.permute.xlu0 %491
  %v494 = vadd.f32 %v406, %v477
  %v495 = vadd.f32 %v407, %v482
  %v496 = vadd.f32 %v408, %v487
  %v497 = vadd.f32 %v409, %v492
  %v498 = vadd.f32 %v410, %v477
  %v499 = vadd.f32 %v411, %v482
  %v500 = vadd.f32 %v412, %v487
  %v501 = vadd.f32 %v413, %v492
  %v502 = vadd.f32 %v414, %v477
  %v503 = vadd.f32 %v415, %v482
  %v504 = vadd.f32 %v416, %v487
  %v505 = vadd.f32 %v417, %v492
  %v506 = vadd.f32 %v418, %v477
  %v507 = vadd.f32 %v419, %v482
  %v508 = vadd.f32 %v420, %v487
  %v509 = vadd.f32 %v421, %v492
  %v510 = vadd.f32 %v422, %v477
  %v511 = vadd.f32 %v423, %v482
  %v512 = vadd.f32 %v424, %v487
  %v513 = vadd.f32 %v425, %v492
  %v514 = vadd.f32 %v426, %v477
  %v515 = vadd.f32 %v427, %v482
  %v516 = vadd.f32 %v428, %v487
  %v517 = vadd.f32 %v429, %v492
  %v518 = vadd.f32 %v430, %v477
  %v519 = vadd.f32 %v431, %v482
  %v520 = vadd.f32 %v432, %v487
  %v521 = vadd.f32 %v433, %v492
  %v522 = vadd.f32 %v434, %v477
  %v523 = vadd.f32 %v435, %v482
  %v524 = vadd.f32 %v436, %v487
  %v525 = vadd.f32 %v437, %v492
  %v526 = vadd.f32 %v438, %v477
  %v527 = vadd.f32 %v439, %v482
  %v528 = vadd.f32 %v440, %v487
  %v529 = vadd.f32 %v441, %v492
  %v530 = vadd.f32 %v442, %v477
  %v531 = vadd.f32 %v443, %v482
  %v532 = vadd.f32 %v444, %v487
  %v533 = vadd.f32 %v445, %v492
  %v534 = vadd.f32 %v446, %v477
  %v535 = vadd.f32 %v447, %v482
  %v536 = vadd.f32 %v448, %v487
  %v537 = vadd.f32 %v449, %v492
  %v538 = vadd.f32 %v450, %v477
  %v539 = vadd.f32 %v451, %v482
  %v540 = vadd.f32 %v452, %v487
  %v541 = vadd.f32 %v453, %v492
  %v542 = vadd.f32 %v454, %v477
  %v543 = vadd.f32 %v455, %v482
  %v544 = vadd.f32 %v456, %v487
  %v545 = vadd.f32 %v457, %v492
  %v546 = vadd.f32 %v458, %v477
  %v547 = vadd.f32 %v459, %v482
  %v548 = vadd.f32 %v460, %v487
  %v549 = vadd.f32 %v461, %v492
  %v550 = vadd.f32 %v462, %v477
  %v551 = vadd.f32 %v463, %v482
  %v552 = vadd.f32 %v464, %v487
  %v553 = vadd.f32 %v465, %v492
  %v554 = vadd.f32 %v466, %v477
  %v555 = vadd.f32 %v467, %v482
  %v556 = vadd.f32 %v468, %v487
  %v557 = vadd.f32 %v469, %v492
  %v558 = vtanh.pop %v494
  %v559 = vtanh.pop %v495
  %v560 = vtanh.pop %v496
  %v561 = vtanh.pop %v497
  %v562 = vtanh.pop %v498
  %v563 = vtanh.pop %v499
  %v564 = vtanh.pop %v500
  %v565 = vtanh.pop %v501
  %v566 = vtanh.pop %v502
  %v567 = vtanh.pop %v503
  %v568 = vtanh.pop %v504
  %v569 = vtanh.pop %v505
  %v570 = vtanh.pop %v506
  %v571 = vtanh.pop %v507
  %v572 = vtanh.pop %v508
  %v573 = vtanh.pop %v509
  %v574 = vtanh.pop %v510
  %v575 = vtanh.pop %v511
  %v576 = vtanh.pop %v512
  %v577 = vtanh.pop %v513
  %v578 = vtanh.pop %v514
  %v579 = vtanh.pop %v515
  %v580 = vtanh.pop %v516
  %v581 = vtanh.pop %v517
  %v582 = vtanh.pop %v518
  %v583 = vtanh.pop %v519
  %v584 = vtanh.pop %v520
  %v585 = vtanh.pop %v521
  %v586 = vtanh.pop %v522
  %v587 = vtanh.pop %v523
  %v588 = vtanh.pop %v524
  %v589 = vtanh.pop %v525
  %v590 = vtanh.pop %v526
  %v591 = vtanh.pop %v527
  %v592 = vtanh.pop %v528
  %v593 = vtanh.pop %v529
  %v594 = vtanh.pop %v530
  %v595 = vtanh.pop %v531
  %v596 = vtanh.pop %v532
  %v597 = vtanh.pop %v533
  %v598 = vtanh.pop %v534
  %v599 = vtanh.pop %v535
  %v600 = vtanh.pop %v536
  %v601 = vtanh.pop %v537
  %v602 = vtanh.pop %v538
  %v603 = vtanh.pop %v539
  %v604 = vtanh.pop %v540
  %v605 = vtanh.pop %v541
  %v606 = vtanh.pop %v542
  %v607 = vtanh.pop %v543
  %v608 = vtanh.pop %v544
  %v609 = vtanh.pop %v545
  %v610 = vtanh.pop %v546
  %v611 = vtanh.pop %v547
  %v612 = vtanh.pop %v548
  %v613 = vtanh.pop %v549
  %v614 = vtanh.pop %v550
  %v615 = vtanh.pop %v551
  %v616 = vtanh.pop %v552
  %v617 = vtanh.pop %v553
  %v618 = vtanh.pop %v554
  %v619 = vtanh.pop %v555
  %v620 = vtanh.pop %v556
  %v621 = vtanh.pop %v557
  %v622 = vld [vmem:[%s5] sm:$0xff]
  %v623 = vld [vmem:[%s5 + $0x8] sm:$0xff]
  %v624 = vld [vmem:[%s5 + $0x10] sm:$0xff]
  %v625 = vld [vmem:[%s5 + $0x18] sm:$0xff]
  %v626 = vld [vmem:[%s6] sm:$0xff]
  %v627 = vld [vmem:[%s6 + $0x8] sm:$0xff]
  %v628 = vld [vmem:[%s6 + $0x10] sm:$0xff]
  %v629 = vld [vmem:[%s6 + $0x18] sm:$0xff]
  %631 = vset.pattern.permute.xlu0 0
  %632 = vperm.xlu0 %631, %v626
  %v633 = vpop.permute.xlu0 %632
  %636 = vset.pattern.permute.xlu0 0
  %637 = vperm.xlu0 %636, %v627
  %v638 = vpop.permute.xlu0 %637
  %641 = vset.pattern.permute.xlu0 0
  %642 = vperm.xlu0 %641, %v628
  %v643 = vpop.permute.xlu0 %642
  %646 = vset.pattern.permute.xlu0 0
  %647 = vperm.xlu0 %646, %v629
  %v648 = vpop.permute.xlu0 %647
  %vm650 = vcmask 261120
  %v652 = vsel %vm650, %v622, 0
  %v655 = vsel %vm650, %v623, 0
  %v658 = vsel %vm650, %v624, 0
  %v661 = vsel %vm650, %v625, 0
  %663 = vmatprep.subr.mxu0 0.0
  %664 = vmatpush1.msra.mxu0 %v558
  %665 = vmatprep.subr.mxu0 0.0
  %666 = vmatpush1.msra.mxu0 %v559
  %667 = vmatprep.subr.mxu0 0.0
  %668 = vmatpush1.msra.mxu0 %v560
  %669 = vmatprep.subr.mxu0 0.0
  %670 = vmatpush1.msra.mxu0 %v561
  %671 = vmatprep.subr.mxu0 0.0
  %672 = vmatpush1.msra.mxu0 0.0
  %673 = vmatprep.subr.mxu0 0.0
  %674 = vmatpush1.msra.mxu0 0.0
  %675 = vmatprep.subr.mxu0 0.0
  %676 = vmatpush1.msra.mxu0 0.0
  %677 = vmatprep.subr.mxu0 0.0
  %678 = vmatpush1.msra.mxu0 0.0
  %679 = vmatprep.subr.mxu0 0.0
  %680 = vmatpush1.msra.mxu0 0.0
  %681 = vmatprep.subr.mxu0 0.0
  %682 = vmatpush1.msra.mxu0 0.0
  %683 = vmatprep.subr.mxu0 0.0
  %684 = vmatpush1.msra.mxu0 0.0
  %685 = vmatprep.subr.mxu0 0.0
  %686 = vmatpush1.msra.mxu0 0.0
  %687 = vmatprep.subr.mxu0 0.0
  %688 = vmatpush1.msra.mxu0 0.0
  %689 = vmatprep.subr.mxu0 0.0
  %690 = vmatpush1.msra.mxu0 0.0
  %691 = vmatprep.subr.mxu0 0.0
  %692 = vmatpush1.msra.mxu0 0.0
  %693 = vmatprep.subr.mxu0 0.0
  %694 = vmatpush1.msra.mxu0 0.0
  %695 = vmatprep.subr.mxu0 0.0
  %696 = vmatpush1.msra.mxu0 0.0
  %697 = vmatprep.subr.mxu0 0.0
  %698 = vmatpush1.msra.mxu0 0.0
  %699 = vmatprep.subr.mxu0 0.0
  %700 = vmatpush1.msra.mxu0 0.0
  %701 = vmatprep.subr.mxu0 0.0
  %702 = vmatpush1.msra.mxu0 0.0
  %703 = vmatprep.subr.mxu0 0.0
  %704 = vmatpush1.msra.mxu0 0.0
  %705 = vmatprep.subr.mxu0 0.0
  %706 = vmatpush1.msra.mxu0 0.0
  %707 = vmatprep.subr.mxu0 0.0
  %708 = vmatpush1.msra.mxu0 0.0
  %709 = vmatprep.subr.mxu0 0.0
  %710 = vmatpush1.msra.mxu0 0.0
  %711 = vmatprep.subr.mxu0 0.0
  %712 = vmatpush1.msra.mxu0 0.0
  %713 = vmatprep.subr.mxu0 0.0
  %714 = vmatpush1.msra.mxu0 0.0
  %715 = vmatprep.subr.mxu0 0.0
  %716 = vmatpush1.msra.mxu0 0.0
  %717 = vmatprep.subr.mxu0 0.0
  %718 = vmatpush1.msra.mxu0 0.0
  %719 = vmatprep.subr.mxu0 0.0
  %720 = vmatpush1.msra.mxu0 0.0
  %721 = vmatprep.subr.mxu0 0.0
  %722 = vmatpush1.msra.mxu0 0.0
  %723 = vmatprep.subr.mxu0 0.0
  %724 = vmatpush1.msra.mxu0 0.0
  %725 = vmatprep.subr.mxu0 0.0
  %726 = vmatpush1.msra.mxu0 0.0
  %727 = vmatprep.mubr.f32.mxu0 0.0
  %728 = vmatmul.mubr.f32.gmra.mrb[0].mxu0 %v652
  %v729 = vpop.f32.mrb[0].mxu0
  %v730 = vadd.f32 %v633, %v729
  %v731 = vpop.f32.mrb[0].mxu0
  %732 = vmatprep.mubr.f32.mxu0 0.0
  %733 = vmatmul.mubr.f32.gmra.mrb[0].mxu0 %v655
  %v734 = vpop.f32.mrb[0].mxu0
  %v735 = vadd.f32 %v638, %v734
  %v736 = vpop.f32.mrb[0].mxu0
  %737 = vmatprep.mubr.f32.mxu0 0.0
  %738 = vmatmul.mubr.f32.gmra.mrb[0].mxu0 %v658
  %v739 = vpop.f32.mrb[0].mxu0
  %v740 = vadd.f32 %v643, %v739
  %v741 = vpop.f32.mrb[0].mxu0
  %742 = vmatprep.mubr.f32.mxu0 0.0
  %743 = vmatmul.mubr.f32.gmra.mrb[0].mxu0 %v661
  %v744 = vpop.f32.mrb[0].mxu0
  %v745 = vadd.f32 %v648, %v744
  %v746 = vpop.f32.mrb[0].mxu0
  %747 = vdwg.mxu0
  %748 = vmatprep.subr.mxu0 0.0
  %749 = vmatpush1.msra.mxu0 %v562
  %750 = vmatprep.subr.mxu0 0.0
  %751 = vmatpush1.msra.mxu0 %v563
  %752 = vmatprep.subr.mxu0 0.0
  %753 = vmatpush1.msra.mxu0 %v564
  %754 = vmatprep.subr.mxu0 0.0
  %755 = vmatpush1.msra.mxu0 %v565
  %756 = vmatprep.subr.mxu0 0.0
  %757 = vmatpush1.msra.mxu0 0.0
  %758 = vmatprep.subr.mxu0 0.0
  %759 = vmatpush1.msra.mxu0 0.0
  %760 = vmatprep.subr.mxu0 0.0
  %761 = vmatpush1.msra.mxu0 0.0
  %762 = vmatprep.subr.mxu0 0.0
  %763 = vmatpush1.msra.mxu0 0.0
  %764 = vmatprep.subr.mxu0 0.0
  %765 = vmatpush1.msra.mxu0 0.0
  %766 = vmatprep.subr.mxu0 0.0
  %767 = vmatpush1.msra.mxu0 0.0
  %768 = vmatprep.subr.mxu0 0.0
  %769 = vmatpush1.msra.mxu0 0.0
  %770 = vmatprep.subr.mxu0 0.0
  %771 = vmatpush1.msra.mxu0 0.0
  %772 = vmatprep.subr.mxu0 0.0
  %773 = vmatpush1.msra.mxu0 0.0
  %774 = vmatprep.subr.mxu0 0.0
  %775 = vmatpush1.msra.mxu0 0.0
  %776 = vmatprep.subr.mxu0 0.0
  %777 = vmatpush1.msra.mxu0 0.0
  %778 = vmatprep.subr.mxu0 0.0
  %779 = vmatpush1.msra.mxu0 0.0
  %780 = vmatprep.subr.mxu0 0.0
  %781 = vmatpush1.msra.mxu0 0.0
  %782 = vmatprep.subr.mxu0 0.0
  %783 = vmatpush1.msra.mxu0 0.0
  %784 = vmatprep.subr.mxu0 0.0
  %785 = vmatpush1.msra.mxu0 0.0
  %786 = vmatprep.subr.mxu0 0.0
  %787 = vmatpush1.msra.mxu0 0.0
  %788 = vmatprep.subr.mxu0 0.0
  %789 = vmatpush1.msra.mxu0 0.0
  %790 = vmatprep.subr.mxu0 0.0
  %791 = vmatpush1.msra.mxu0 0.0
  %792 = vmatprep.subr.mxu0 0.0
  %793 = vmatpush1.msra.mxu0 0.0
  %794 = vmatprep.subr.mxu0 0.0
  %795 = vmatpush1.msra.mxu0 0.0
  %796 = vmatprep.subr.mxu0 0.0
  %797 = vmatpush1.msra.mxu0 0.0
  %798 = vmatprep.subr.mxu0 0.0
  %799 = vmatpush1.msra.mxu0 0.0
  %800 = vmatprep.subr.mxu0 0.0
  %801 = vmatpush1.msra.mxu0 0.0
  %802 = vmatprep.subr.mxu0 0.0
  %803 = vmatpush1.msra.mxu0 0.0
  %804 = vmatprep.subr.mxu0 0.0
  %805 = vmatpush1.msra.mxu0 0.0
  %806 = vmatprep.subr.mxu0 0.0
  %807 = vmatpush1.msra.mxu0 0.0
  %808 = vmatprep.subr.mxu0 0.0
  %809 = vmatpush1.msra.mxu0 0.0
  %810 = vmatprep.subr.mxu0 0.0
  %811 = vmatpush1.msra.mxu0 0.0
  %812 = vmatprep.mubr.f32.mxu0 0.0
  %813 = vmatmul.mubr.f32.gmra.mrb[0].mxu0 %v652
  %v814 = vpop.f32.mrb[0].mxu0
  %v815 = vadd.f32 %v633, %v814
  %v816 = vpop.f32.mrb[0].mxu0
  %817 = vmatprep.mubr.f32.mxu0 0.0
  %818 = vmatmul.mubr.f32.gmra.mrb[0].mxu0 %v655
  %v819 = vpop.f32.mrb[0].mxu0
  %v820 = vadd.f32 %v638, %v819
  %v821 = vpop.f32.mrb[0].mxu0
  %822 = vmatprep.mubr.f32.mxu0 0.0
  %823 = vmatmul.mubr.f32.gmra.mrb[0].mxu0 %v658
  %v824 = vpop.f32.mrb[0].mxu0
  %v825 = vadd.f32 %v643, %v824
  %v826 = vpop.f32.mrb[0].mxu0
  %827 = vmatprep.mubr.f32.mxu0 0.0
  %828 = vmatmul.mubr.f32.gmra.mrb[0].mxu0 %v661
  %v829 = vpop.f32.mrb[0].mxu0
  %v830 = vadd.f32 %v648, %v829
  %v831 = vpop.f32.mrb[0].mxu0
  %832 = vdwg.mxu0
  %833 = vmatprep.subr.mxu0 0.0
  %834 = vmatpush1.msra.mxu0 %v566
  %835 = vmatprep.subr.mxu0 0.0
  %836 = vmatpush1.msra.mxu0 %v567
  %837 = vmatprep.subr.mxu0 0.0
  %838 = vmatpush1.msra.mxu0 %v568
  %839 = vmatprep.subr.mxu0 0.0
  %840 = vmatpush1.msra.mxu0 %v569
  %841 = vmatprep.subr.mxu0 0.0
  %842 = vmatpush1.msra.mxu0 0.0
  %843 = vmatprep.subr.mxu0 0.0
  %844 = vmatpush1.msra.mxu0 0.0
  %845 = vmatprep.subr.mxu0 0.0
  %846 = vmatpush1.msra.mxu0 0.0
  %847 = vmatprep.subr.mxu0 0.0
  %848 = vmatpush1.msra.mxu0 0.0
  %849 = vmatprep.subr.mxu0 0.0
  %850 = vmatpush1.msra.mxu0 0.0
  %851 = vmatprep.subr.mxu0 0.0
  %852 = vmatpush1.msra.mxu0 0.0
  %853 = vmatprep.subr.mxu0 0.0
  %854 = vmatpush1.msra.mxu0 0.0
  %855 = vmatprep.subr.mxu0 0.0
  %856 = vmatpush1.msra.mxu0 0.0
  %857 = vmatprep.subr.mxu0 0.0
  %858 = vmatpush1.msra.mxu0 0.0
  %859 = vmatprep.subr.mxu0 0.0
  %860 = vmatpush1.msra.mxu0 0.0
  %861 = vmatprep.subr.mxu0 0.0
  %862 = vmatpush1.msra.mxu0 0.0
  %863 = vmatprep.subr.mxu0 0.0
  %864 = vmatpush1.msra.mxu0 0.0
  %865 = vmatprep.subr.mxu0 0.0
  %866 = vmatpush1.msra.mxu0 0.0
  %867 = vmatprep.subr.mxu0 0.0
  %868 = vmatpush1.msra.mxu0 0.0
  %869 = vmatprep.subr.mxu0 0.0
  %870 = vmatpush1.msra.mxu0 0.0
  %871 = vmatprep.subr.mxu0 0.0
  %872 = vmatpush1.msra.mxu0 0.0
  %873 = vmatprep.subr.mxu0 0.0
  %874 = vmatpush1.msra.mxu0 0.0
  %875 = vmatprep.subr.mxu0 0.0
  %876 = vmatpush1.msra.mxu0 0.0
  %877 = vmatprep.subr.mxu0 0.0
  %878 = vmatpush1.msra.mxu0 0.0
  %879 = vmatprep.subr.mxu0 0.0
  %880 = vmatpush1.msra.mxu0 0.0
  %881 = vmatprep.subr.mxu0 0.0
  %882 = vmatpush1.msra.mxu0 0.0
  %883 = vmatprep.subr.mxu0 0.0
  %884 = vmatpush1.msra.mxu0 0.0
  %885 = vmatprep.subr.mxu0 0.0
  %886 = vmatpush1.msra.mxu0 0.0
  %887 = vmatprep.subr.mxu0 0.0
  %888 = vmatpush1.msra.mxu0 0.0
  %889 = vmatprep.subr.mxu0 0.0
  %890 = vmatpush1.msra.mxu0 0.0
  %891 = vmatprep.subr.mxu0 0.0
  %892 = vmatpush1.msra.mxu0 0.0
  %893 = vmatprep.subr.mxu0 0.0
  %894 = vmatpush1.msra.mxu0 0.0
  %895 = vmatprep.subr.mxu0 0.0
  %896 = vmatpush1.msra.mxu0 0.0
  %897 = vmatprep.mubr.f32.mxu0 0.0
  %898 = vmatmul.mubr.f32.gmra.mrb[0].mxu0 %v652
  %v899 = vpop.f32.mrb[0].mxu0
  %v900 = vadd.f32 %v633, %v899
  %v901 = vpop.f32.mrb[0].mxu0
  %902 = vmatprep.mubr.f32.mxu0 0.0
  %903 = vmatmul.mubr.f32.gmra.mrb[0].mxu0 %v655
  %v904 = vpop.f32.mrb[0].mxu0
  %v905 = vadd.f32 %v638, %v904
  %v906 = vpop.f32.mrb[0].mxu0
  %907 = vmatprep.mubr.f32.mxu0 0.0
  %908 = vmatmul.mubr.f32.gmra.mrb[0].mxu0 %v658
  %v909 = vpop.f32.mrb[0].mxu0
  %v910 = vadd.f32 %v643, %v909
  %v911 = vpop.f32.mrb[0].mxu0
  %912 = vmatprep.mubr.f32.mxu0 0.0
  %913 = vmatmul.mubr.f32.gmra.mrb[0].mxu0 %v661
  %v914 = vpop.f32.mrb[0].mxu0
  %v915 = vadd.f32 %v648, %v914
  %v916 = vpop.f32.mrb[0].mxu0
  %917 = vdwg.mxu0
  %918 = vmatprep.subr.mxu0 0.0
  %919 = vmatpush1.msra.mxu0 %v570
  %920 = vmatprep.subr.mxu0 0.0
  %921 = vmatpush1.msra.mxu0 %v571
  %922 = vmatprep.subr.mxu0 0.0
  %923 = vmatpush1.msra.mxu0 %v572
  %924 = vmatprep.subr.mxu0 0.0
  %925 = vmatpush1.msra.mxu0 %v573
  %926 = vmatprep.subr.mxu0 0.0
  %927 = vmatpush1.msra.mxu0 0.0
  %928 = vmatprep.subr.mxu0 0.0
  %929 = vmatpush1.msra.mxu0 0.0
  %930 = vmatprep.subr.mxu0 0.0
  %931 = vmatpush1.msra.mxu0 0.0
  %932 = vmatprep.subr.mxu0 0.0
  %933 = vmatpush1.msra.mxu0 0.0
  %934 = vmatprep.subr.mxu0 0.0
  %935 = vmatpush1.msra.mxu0 0.0
  %936 = vmatprep.subr.mxu0 0.0
  %937 = vmatpush1.msra.mxu0 0.0
  %938 = vmatprep.subr.mxu0 0.0
  %939 = vmatpush1.msra.mxu0 0.0
  %940 = vmatprep.subr.mxu0 0.0
  %941 = vmatpush1.msra.mxu0 0.0
  %942 = vmatprep.subr.mxu0 0.0
  %943 = vmatpush1.msra.mxu0 0.0
  %944 = vmatprep.subr.mxu0 0.0
  %945 = vmatpush1.msra.mxu0 0.0
  %946 = vmatprep.subr.mxu0 0.0
  %947 = vmatpush1.msra.mxu0 0.0
  %948 = vmatprep.subr.mxu0 0.0
  %949 = vmatpush1.msra.mxu0 0.0
  %950 = vmatprep.subr.mxu0 0.0
  %951 = vmatpush1.msra.mxu0 0.0
  %952 = vmatprep.subr.mxu0 0.0
  %953 = vmatpush1.msra.mxu0 0.0
  %954 = vmatprep.subr.mxu0 0.0
  %955 = vmatpush1.msra.mxu0 0.0
  %956 = vmatprep.subr.mxu0 0.0
  %957 = vmatpush1.msra.mxu0 0.0
  %958 = vmatprep.subr.mxu0 0.0
  %959 = vmatpush1.msra.mxu0 0.0
  %960 = vmatprep.subr.mxu0 0.0
  %961 = vmatpush1.msra.mxu0 0.0
  %962 = vmatprep.subr.mxu0 0.0
  %963 = vmatpush1.msra.mxu0 0.0
  %964 = vmatprep.subr.mxu0 0.0
  %965 = vmatpush1.msra.mxu0 0.0
  %966 = vmatprep.subr.mxu0 0.0
  %967 = vmatpush1.msra.mxu0 0.0
  %968 = vmatprep.subr.mxu0 0.0
  %969 = vmatpush1.msra.mxu0 0.0
  %970 = vmatprep.subr.mxu0 0.0
  %971 = vmatpush1.msra.mxu0 0.0
  %972 = vmatprep.subr.mxu0 0.0
  %973 = vmatpush1.msra.mxu0 0.0
  %974 = vmatprep.subr.mxu0 0.0
  %975 = vmatpush1.msra.mxu0 0.0
  %976 = vmatprep.subr.mxu0 0.0
  %977 = vmatpush1.msra.mxu0 0.0
  %978 = vmatprep.subr.mxu0 0.0
  %979 = vmatpush1.msra.mxu0 0.0
  %980 = vmatprep.subr.mxu0 0.0
  %981 = vmatpush1.msra.mxu0 0.0
  %982 = vmatprep.mubr.f32.mxu0 0.0
  %983 = vmatmul.mubr.f32.gmra.mrb[0].mxu0 %v652
  %v984 = vpop.f32.mrb[0].mxu0
  %v985 = vadd.f32 %v633, %v984
  %v986 = vpop.f32.mrb[0].mxu0
  %987 = vmatprep.mubr.f32.mxu0 0.0
  %988 = vmatmul.mubr.f32.gmra.mrb[0].mxu0 %v655
  %v989 = vpop.f32.mrb[0].mxu0
  %v990 = vadd.f32 %v638, %v989
  %v991 = vpop.f32.mrb[0].mxu0
  %992 = vmatprep.mubr.f32.mxu0 0.0
  %993 = vmatmul.mubr.f32.gmra.mrb[0].mxu0 %v658
  %v994 = vpop.f32.mrb[0].mxu0
  %v995 = vadd.f32 %v643, %v994
  %v996 = vpop.f32.mrb[0].mxu0
  %997 = vmatprep.mubr.f32.mxu0 0.0
  %998 = vmatmul.mubr.f32.gmra.mrb[0].mxu0 %v661
  %v999 = vpop.f32.mrb[0].mxu0
  %v1000 = vadd.f32 %v648, %v999
  %v1001 = vpop.f32.mrb[0].mxu0
  %1002 = vdwg.mxu0
  %1003 = vmatprep.subr.mxu0 0.0
  %1004 = vmatpush1.msra.mxu0 %v574
  %1005 = vmatprep.subr.mxu0 0.0
  %1006 = vmatpush1.msra.mxu0 %v575
  %1007 = vmatprep.subr.mxu0 0.0
  %1008 = vmatpush1.msra.mxu0 %v576
  %1009 = vmatprep.subr.mxu0 0.0
  %1010 = vmatpush1.msra.mxu0 %v577
  %1011 = vmatprep.subr.mxu0 0.0
  %1012 = vmatpush1.msra.mxu0 0.0
  %1013 = vmatprep.subr.mxu0 0.0
  %1014 = vmatpush1.msra.mxu0 0.0
  %1015 = vmatprep.subr.mxu0 0.0
  %1016 = vmatpush1.msra.mxu0 0.0
  %1017 = vmatprep.subr.mxu0 0.0
  %1018 = vmatpush1.msra.mxu0 0.0
  %1019 = vmatprep.subr.mxu0 0.0
  %1020 = vmatpush1.msra.mxu0 0.0
  %1021 = vmatprep.subr.mxu0 0.0
  %1022 = vmatpush1.msra.mxu0 0.0
  %1023 = vmatprep.subr.mxu0 0.0
  %1024 = vmatpush1.msra.mxu0 0.0
  %1025 = vmatprep.subr.mxu0 0.0
  %1026 = vmatpush1.msra.mxu0 0.0
  %1027 = vmatprep.subr.mxu0 0.0
  %1028 = vmatpush1.msra.mxu0 0.0
  %1029 = vmatprep.subr.mxu0 0.0
  %1030 = vmatpush1.msra.mxu0 0.0
  %1031 = vmatprep.subr.mxu0 0.0
  %1032 = vmatpush1.msra.mxu0 0.0
  %1033 = vmatprep.subr.mxu0 0.0
  %1034 = vmatpush1.msra.mxu0 0.0
  %1035 = vmatprep.subr.mxu0 0.0
  %1036 = vmatpush1.msra.mxu0 0.0
  %1037 = vmatprep.subr.mxu0 0.0
  %1038 = vmatpush1.msra.mxu0 0.0
  %1039 = vmatprep.subr.mxu0 0.0
  %1040 = vmatpush1.msra.mxu0 0.0
  %1041 = vmatprep.subr.mxu0 0.0
  %1042 = vmatpush1.msra.mxu0 0.0
  %1043 = vmatprep.subr.mxu0 0.0
  %1044 = vmatpush1.msra.mxu0 0.0
  %1045 = vmatprep.subr.mxu0 0.0
  %1046 = vmatpush1.msra.mxu0 0.0
  %1047 = vmatprep.subr.mxu0 0.0
  %1048 = vmatpush1.msra.mxu0 0.0
  %1049 = vmatprep.subr.mxu0 0.0
  %1050 = vmatpush1.msra.mxu0 0.0
  %1051 = vmatprep.subr.mxu0 0.0
  %1052 = vmatpush1.msra.mxu0 0.0
  %1053 = vmatprep.subr.mxu0 0.0
  %1054 = vmatpush1.msra.mxu0 0.0
  %1055 = vmatprep.subr.mxu0 0.0
  %1056 = vmatpush1.msra.mxu0 0.0
  %1057 = vmatprep.subr.mxu0 0.0
  %1058 = vmatpush1.msra.mxu0 0.0
  %1059 = vmatprep.subr.mxu0 0.0
  %1060 = vmatpush1.msra.mxu0 0.0
  %1061 = vmatprep.subr.mxu0 0.0
  %1062 = vmatpush1.msra.mxu0 0.0
  %1063 = vmatprep.subr.mxu0 0.0
  %1064 = vmatpush1.msra.mxu0 0.0
  %1065 = vmatprep.subr.mxu0 0.0
  %1066 = vmatpush1.msra.mxu0 0.0
  %1067 = vmatprep.mubr.f32.mxu0 0.0
  %1068 = vmatmul.mubr.f32.gmra.mrb[0].mxu0 %v652
  %v1069 = vpop.f32.mrb[0].mxu0
  %v1070 = vadd.f32 %v633, %v1069
  %v1071 = vpop.f32.mrb[0].mxu0
  %1072 = vmatprep.mubr.f32.mxu0 0.0
  %1073 = vmatmul.mubr.f32.gmra.mrb[0].mxu0 %v655
  %v1074 = vpop.f32.mrb[0].mxu0
  %v1075 = vadd.f32 %v638, %v1074
  %v1076 = vpop.f32.mrb[0].mxu0
  %1077 = vmatprep.mubr.f32.mxu0 0.0
  %1078 = vmatmul.mubr.f32.gmra.mrb[0].mxu0 %v658
  %v1079 = vpop.f32.mrb[0].mxu0
  %v1080 = vadd.f32 %v643, %v1079
  %v1081 = vpop.f32.mrb[0].mxu0
  %1082 = vmatprep.mubr.f32.mxu0 0.0
  %1083 = vmatmul.mubr.f32.gmra.mrb[0].mxu0 %v661
  %v1084 = vpop.f32.mrb[0].mxu0
  %v1085 = vadd.f32 %v648, %v1084
  %v1086 = vpop.f32.mrb[0].mxu0
  %1087 = vdwg.mxu0
  %1088 = vmatprep.subr.mxu0 0.0
  %1089 = vmatpush1.msra.mxu0 %v578
  %1090 = vmatprep.subr.mxu0 0.0
  %1091 = vmatpush1.msra.mxu0 %v579
  %1092 = vmatprep.subr.mxu0 0.0
  %1093 = vmatpush1.msra.mxu0 %v580
  %1094 = vmatprep.subr.mxu0 0.0
  %1095 = vmatpush1.msra.mxu0 %v581
  %1096 = vmatprep.subr.mxu0 0.0
  %1097 = vmatpush1.msra.mxu0 0.0
  %1098 = vmatprep.subr.mxu0 0.0
  %1099 = vmatpush1.msra.mxu0 0.0
  %1100 = vmatprep.subr.mxu0 0.0
  %1101 = vmatpush1.msra.mxu0 0.0
  %1102 = vmatprep.subr.mxu0 0.0
  %1103 = vmatpush1.msra.mxu0 0.0
  %1104 = vmatprep.subr.mxu0 0.0
  %1105 = vmatpush1.msra.mxu0 0.0
  %1106 = vmatprep.subr.mxu0 0.0
  %1107 = vmatpush1.msra.mxu0 0.0
  %1108 = vmatprep.subr.mxu0 0.0
  %1109 = vmatpush1.msra.mxu0 0.0
  %1110 = vmatprep.subr.mxu0 0.0
  %1111 = vmatpush1.msra.mxu0 0.0
  %1112 = vmatprep.subr.mxu0 0.0
  %1113 = vmatpush1.msra.mxu0 0.0
  %1114 = vmatprep.subr.mxu0 0.0
  %1115 = vmatpush1.msra.mxu0 0.0
  %1116 = vmatprep.subr.mxu0 0.0
  %1117 = vmatpush1.msra.mxu0 0.0
  %1118 = vmatprep.subr.mxu0 0.0
  %1119 = vmatpush1.msra.mxu0 0.0
  %1120 = vmatprep.subr.mxu0 0.0
  %1121 = vmatpush1.msra.mxu0 0.0
  %1122 = vmatprep.subr.mxu0 0.0
  %1123 = vmatpush1.msra.mxu0 0.0
  %1124 = vmatprep.subr.mxu0 0.0
  %1125 = vmatpush1.msra.mxu0 0.0
  %1126 = vmatprep.subr.mxu0 0.0
  %1127 = vmatpush1.msra.mxu0 0.0
  %1128 = vmatprep.subr.mxu0 0.0
  %1129 = vmatpush1.msra.mxu0 0.0
  %1130 = vmatprep.subr.mxu0 0.0
  %1131 = vmatpush1.msra.mxu0 0.0
  %1132 = vmatprep.subr.mxu0 0.0
  %1133 = vmatpush1.msra.mxu0 0.0
  %1134 = vmatprep.subr.mxu0 0.0
  %1135 = vmatpush1.msra.mxu0 0.0
  %1136 = vmatprep.subr.mxu0 0.0
  %1137 = vmatpush1.msra.mxu0 0.0
  %1138 = vmatprep.subr.mxu0 0.0
  %1139 = vmatpush1.msra.mxu0 0.0
  %1140 = vmatprep.subr.mxu0 0.0
  %1141 = vmatpush1.msra.mxu0 0.0
  %1142 = vmatprep.subr.mxu0 0.0
  %1143 = vmatpush1.msra.mxu0 0.0
  %1144 = vmatprep.subr.mxu0 0.0
  %1145 = vmatpush1.msra.mxu0 0.0
  %1146 = vmatprep.subr.mxu0 0.0
  %1147 = vmatpush1.msra.mxu0 0.0
  %1148 = vmatprep.subr.mxu0 0.0
  %1149 = vmatpush1.msra.mxu0 0.0
  %1150 = vmatprep.subr.mxu0 0.0
  %1151 = vmatpush1.msra.mxu0 0.0
  %1152 = vmatprep.mubr.f32.mxu0 0.0
  %1153 = vmatmul.mubr.f32.gmra.mrb[0].mxu0 %v652
  %v1154 = vpop.f32.mrb[0].mxu0
  %v1155 = vadd.f32 %v633, %v1154
  %v1156 = vpop.f32.mrb[0].mxu0
  %1157 = vmatprep.mubr.f32.mxu0 0.0
  %1158 = vmatmul.mubr.f32.gmra.mrb[0].mxu0 %v655
  %v1159 = vpop.f32.mrb[0].mxu0
  %v1160 = vadd.f32 %v638, %v1159
  %v1161 = vpop.f32.mrb[0].mxu0
  %1162 = vmatprep.mubr.f32.mxu0 0.0
  %1163 = vmatmul.mubr.f32.gmra.mrb[0].mxu0 %v658
  %v1164 = vpop.f32.mrb[0].mxu0
  %v1165 = vadd.f32 %v643, %v1164
  %v1166 = vpop.f32.mrb[0].mxu0
  %1167 = vmatprep.mubr.f32.mxu0 0.0
  %1168 = vmatmul.mubr.f32.gmra.mrb[0].mxu0 %v661
  %v1169 = vpop.f32.mrb[0].mxu0
  %v1170 = vadd.f32 %v648, %v1169
  %v1171 = vpop.f32.mrb[0].mxu0
  %1172 = vdwg.mxu0
  %1173 = vmatprep.subr.mxu0 0.0
  %1174 = vmatpush1.msra.mxu0 %v582
  %1175 = vmatprep.subr.mxu0 0.0
  %1176 = vmatpush1.msra.mxu0 %v583
  %1177 = vmatprep.subr.mxu0 0.0
  %1178 = vmatpush1.msra.mxu0 %v584
  %1179 = vmatprep.subr.mxu0 0.0
  %1180 = vmatpush1.msra.mxu0 %v585
  %1181 = vmatprep.subr.mxu0 0.0
  %1182 = vmatpush1.msra.mxu0 0.0
  %1183 = vmatprep.subr.mxu0 0.0
  %1184 = vmatpush1.msra.mxu0 0.0
  %1185 = vmatprep.subr.mxu0 0.0
  %1186 = vmatpush1.msra.mxu0 0.0
  %1187 = vmatprep.subr.mxu0 0.0
  %1188 = vmatpush1.msra.mxu0 0.0
  %1189 = vmatprep.subr.mxu0 0.0
  %1190 = vmatpush1.msra.mxu0 0.0
  %1191 = vmatprep.subr.mxu0 0.0
  %1192 = vmatpush1.msra.mxu0 0.0
  %1193 = vmatprep.subr.mxu0 0.0
  %1194 = vmatpush1.msra.mxu0 0.0
  %1195 = vmatprep.subr.mxu0 0.0
  %1196 = vmatpush1.msra.mxu0 0.0
  %1197 = vmatprep.subr.mxu0 0.0
  %1198 = vmatpush1.msra.mxu0 0.0
  %1199 = vmatprep.subr.mxu0 0.0
  %1200 = vmatpush1.msra.mxu0 0.0
  %1201 = vmatprep.subr.mxu0 0.0
  %1202 = vmatpush1.msra.mxu0 0.0
  %1203 = vmatprep.subr.mxu0 0.0
  %1204 = vmatpush1.msra.mxu0 0.0
  %1205 = vmatprep.subr.mxu0 0.0
  %1206 = vmatpush1.msra.mxu0 0.0
  %1207 = vmatprep.subr.mxu0 0.0
  %1208 = vmatpush1.msra.mxu0 0.0
  %1209 = vmatprep.subr.mxu0 0.0
  %1210 = vmatpush1.msra.mxu0 0.0
  %1211 = vmatprep.subr.mxu0 0.0
  %1212 = vmatpush1.msra.mxu0 0.0
  %1213 = vmatprep.subr.mxu0 0.0
  %1214 = vmatpush1.msra.mxu0 0.0
  %1215 = vmatprep.subr.mxu0 0.0
  %1216 = vmatpush1.msra.mxu0 0.0
  %1217 = vmatprep.subr.mxu0 0.0
  %1218 = vmatpush1.msra.mxu0 0.0
  %1219 = vmatprep.subr.mxu0 0.0
  %1220 = vmatpush1.msra.mxu0 0.0
  %1221 = vmatprep.subr.mxu0 0.0
  %1222 = vmatpush1.msra.mxu0 0.0
  %1223 = vmatprep.subr.mxu0 0.0
  %1224 = vmatpush1.msra.mxu0 0.0
  %1225 = vmatprep.subr.mxu0 0.0
  %1226 = vmatpush1.msra.mxu0 0.0
  %1227 = vmatprep.subr.mxu0 0.0
  %1228 = vmatpush1.msra.mxu0 0.0
  %1229 = vmatprep.subr.mxu0 0.0
  %1230 = vmatpush1.msra.mxu0 0.0
  %1231 = vmatprep.subr.mxu0 0.0
  %1232 = vmatpush1.msra.mxu0 0.0
  %1233 = vmatprep.subr.mxu0 0.0
  %1234 = vmatpush1.msra.mxu0 0.0
  %1235 = vmatprep.subr.mxu0 0.0
  %1236 = vmatpush1.msra.mxu0 0.0
  %1237 = vmatprep.mubr.f32.mxu0 0.0
  %1238 = vmatmul.mubr.f32.gmra.mrb[0].mxu0 %v652
  %v1239 = vpop.f32.mrb[0].mxu0
  %v1240 = vadd.f32 %v633, %v1239
  %v1241 = vpop.f32.mrb[0].mxu0
  %1242 = vmatprep.mubr.f32.mxu0 0.0
  %1243 = vmatmul.mubr.f32.gmra.mrb[0].mxu0 %v655
  %v1244 = vpop.f32.mrb[0].mxu0
  %v1245 = vadd.f32 %v638, %v1244
  %v1246 = vpop.f32.mrb[0].mxu0
  %1247 = vmatprep.mubr.f32.mxu0 0.0
  %1248 = vmatmul.mubr.f32.gmra.mrb[0].mxu0 %v658
  %v1249 = vpop.f32.mrb[0].mxu0
  %v1250 = vadd.f32 %v643, %v1249
  %v1251 = vpop.f32.mrb[0].mxu0
  %1252 = vmatprep.mubr.f32.mxu0 0.0
  %1253 = vmatmul.mubr.f32.gmra.mrb[0].mxu0 %v661
  %v1254 = vpop.f32.mrb[0].mxu0
  %v1255 = vadd.f32 %v648, %v1254
  %v1256 = vpop.f32.mrb[0].mxu0
  %1257 = vdwg.mxu0
  %1258 = vmatprep.subr.mxu0 0.0
  %1259 = vmatpush1.msra.mxu0 %v586
  %1260 = vmatprep.subr.mxu0 0.0
  %1261 = vmatpush1.msra.mxu0 %v587
  %1262 = vmatprep.subr.mxu0 0.0
  %1263 = vmatpush1.msra.mxu0 %v588
  %1264 = vmatprep.subr.mxu0 0.0
  %1265 = vmatpush1.msra.mxu0 %v589
  %1266 = vmatprep.subr.mxu0 0.0
  %1267 = vmatpush1.msra.mxu0 0.0
  %1268 = vmatprep.subr.mxu0 0.0
  %1269 = vmatpush1.msra.mxu0 0.0
  %1270 = vmatprep.subr.mxu0 0.0
  %1271 = vmatpush1.msra.mxu0 0.0
  %1272 = vmatprep.subr.mxu0 0.0
  %1273 = vmatpush1.msra.mxu0 0.0
  %1274 = vmatprep.subr.mxu0 0.0
  %1275 = vmatpush1.msra.mxu0 0.0
  %1276 = vmatprep.subr.mxu0 0.0
  %1277 = vmatpush1.msra.mxu0 0.0
  %1278 = vmatprep.subr.mxu0 0.0
  %1279 = vmatpush1.msra.mxu0 0.0
  %1280 = vmatprep.subr.mxu0 0.0
  %1281 = vmatpush1.msra.mxu0 0.0
  %1282 = vmatprep.subr.mxu0 0.0
  %1283 = vmatpush1.msra.mxu0 0.0
  %1284 = vmatprep.subr.mxu0 0.0
  %1285 = vmatpush1.msra.mxu0 0.0
  %1286 = vmatprep.subr.mxu0 0.0
  %1287 = vmatpush1.msra.mxu0 0.0
  %1288 = vmatprep.subr.mxu0 0.0
  %1289 = vmatpush1.msra.mxu0 0.0
  %1290 = vmatprep.subr.mxu0 0.0
  %1291 = vmatpush1.msra.mxu0 0.0
  %1292 = vmatprep.subr.mxu0 0.0
  %1293 = vmatpush1.msra.mxu0 0.0
  %1294 = vmatprep.subr.mxu0 0.0
  %1295 = vmatpush1.msra.mxu0 0.0
  %1296 = vmatprep.subr.mxu0 0.0
  %1297 = vmatpush1.msra.mxu0 0.0
  %1298 = vmatprep.subr.mxu0 0.0
  %1299 = vmatpush1.msra.mxu0 0.0
  %1300 = vmatprep.subr.mxu0 0.0
  %1301 = vmatpush1.msra.mxu0 0.0
  %1302 = vmatprep.subr.mxu0 0.0
  %1303 = vmatpush1.msra.mxu0 0.0
  %1304 = vmatprep.subr.mxu0 0.0
  %1305 = vmatpush1.msra.mxu0 0.0
  %1306 = vmatprep.subr.mxu0 0.0
  %1307 = vmatpush1.msra.mxu0 0.0
  %1308 = vmatprep.subr.mxu0 0.0
  %1309 = vmatpush1.msra.mxu0 0.0
  %1310 = vmatprep.subr.mxu0 0.0
  %1311 = vmatpush1.msra.mxu0 0.0
  %1312 = vmatprep.subr.mxu0 0.0
  %1313 = vmatpush1.msra.mxu0 0.0
  %1314 = vmatprep.subr.mxu0 0.0
  %1315 = vmatpush1.msra.mxu0 0.0
  %1316 = vmatprep.subr.mxu0 0.0
  %1317 = vmatpush1.msra.mxu0 0.0
  %1318 = vmatprep.subr.mxu0 0.0
  %1319 = vmatpush1.msra.mxu0 0.0
  %1320 = vmatprep.subr.mxu0 0.0
  %1321 = vmatpush1.msra.mxu0 0.0
  %1322 = vmatprep.mubr.f32.mxu0 0.0
  %1323 = vmatmul.mubr.f32.gmra.mrb[0].mxu0 %v652
  %v1324 = vpop.f32.mrb[0].mxu0
  %v1325 = vadd.f32 %v633, %v1324
  %v1326 = vpop.f32.mrb[0].mxu0
  %1327 = vmatprep.mubr.f32.mxu0 0.0
  %1328 = vmatmul.mubr.f32.gmra.mrb[0].mxu0 %v655
  %v1329 = vpop.f32.mrb[0].mxu0
  %v1330 = vadd.f32 %v638, %v1329
  %v1331 = vpop.f32.mrb[0].mxu0
  %1332 = vmatprep.mubr.f32.mxu0 0.0
  %1333 = vmatmul.mubr.f32.gmra.mrb[0].mxu0 %v658
  %v1334 = vpop.f32.mrb[0].mxu0
  %v1335 = vadd.f32 %v643, %v1334
  %v1336 = vpop.f32.mrb[0].mxu0
  %1337 = vmatprep.mubr.f32.mxu0 0.0
  %1338 = vmatmul.mubr.f32.gmra.mrb[0].mxu0 %v661
  %v1339 = vpop.f32.mrb[0].mxu0
  %v1340 = vadd.f32 %v648, %v1339
  %v1341 = vpop.f32.mrb[0].mxu0
  %1342 = vdwg.mxu0
  %1343 = vmatprep.subr.mxu0 0.0
  %1344 = vmatpush1.msra.mxu0 %v590
  %1345 = vmatprep.subr.mxu0 0.0
  %1346 = vmatpush1.msra.mxu0 %v591
  %1347 = vmatprep.subr.mxu0 0.0
  %1348 = vmatpush1.msra.mxu0 %v592
  %1349 = vmatprep.subr.mxu0 0.0
  %1350 = vmatpush1.msra.mxu0 %v593
  %1351 = vmatprep.subr.mxu0 0.0
  %1352 = vmatpush1.msra.mxu0 0.0
  %1353 = vmatprep.subr.mxu0 0.0
  %1354 = vmatpush1.msra.mxu0 0.0
  %1355 = vmatprep.subr.mxu0 0.0
  %1356 = vmatpush1.msra.mxu0 0.0
  %1357 = vmatprep.subr.mxu0 0.0
  %1358 = vmatpush1.msra.mxu0 0.0
  %1359 = vmatprep.subr.mxu0 0.0
  %1360 = vmatpush1.msra.mxu0 0.0
  %1361 = vmatprep.subr.mxu0 0.0
  %1362 = vmatpush1.msra.mxu0 0.0
  %1363 = vmatprep.subr.mxu0 0.0
  %1364 = vmatpush1.msra.mxu0 0.0
  %1365 = vmatprep.subr.mxu0 0.0
  %1366 = vmatpush1.msra.mxu0 0.0
  %1367 = vmatprep.subr.mxu0 0.0
  %1368 = vmatpush1.msra.mxu0 0.0
  %1369 = vmatprep.subr.mxu0 0.0
  %1370 = vmatpush1.msra.mxu0 0.0
  %1371 = vmatprep.subr.mxu0 0.0
  %1372 = vmatpush1.msra.mxu0 0.0
  %1373 = vmatprep.subr.mxu0 0.0
  %1374 = vmatpush1.msra.mxu0 0.0
  %1375 = vmatprep.subr.mxu0 0.0
  %1376 = vmatpush1.msra.mxu0 0.0
  %1377 = vmatprep.subr.mxu0 0.0
  %1378 = vmatpush1.msra.mxu0 0.0
  %1379 = vmatprep.subr.mxu0 0.0
  %1380 = vmatpush1.msra.mxu0 0.0
  %1381 = vmatprep.subr.mxu0 0.0
  %1382 = vmatpush1.msra.mxu0 0.0
  %1383 = vmatprep.subr.mxu0 0.0
  %1384 = vmatpush1.msra.mxu0 0.0
  %1385 = vmatprep.subr.mxu0 0.0
  %1386 = vmatpush1.msra.mxu0 0.0
  %1387 = vmatprep.subr.mxu0 0.0
  %1388 = vmatpush1.msra.mxu0 0.0
  %1389 = vmatprep.subr.mxu0 0.0
  %1390 = vmatpush1.msra.mxu0 0.0
  %1391 = vmatprep.subr.mxu0 0.0
  %1392 = vmatpush1.msra.mxu0 0.0
  %1393 = vmatprep.subr.mxu0 0.0
  %1394 = vmatpush1.msra.mxu0 0.0
  %1395 = vmatprep.subr.mxu0 0.0
  %1396 = vmatpush1.msra.mxu0 0.0
  %1397 = vmatprep.subr.mxu0 0.0
  %1398 = vmatpush1.msra.mxu0 0.0
  %1399 = vmatprep.subr.mxu0 0.0
  %1400 = vmatpush1.msra.mxu0 0.0
  %1401 = vmatprep.subr.mxu0 0.0
  %1402 = vmatpush1.msra.mxu0 0.0
  %1403 = vmatprep.subr.mxu0 0.0
  %1404 = vmatpush1.msra.mxu0 0.0
  %1405 = vmatprep.subr.mxu0 0.0
  %1406 = vmatpush1.msra.mxu0 0.0
  %1407 = vmatprep.mubr.f32.mxu0 0.0
  %1408 = vmatmul.mubr.f32.gmra.mrb[0].mxu0 %v652
  %v1409 = vpop.f32.mrb[0].mxu0
  %v1410 = vadd.f32 %v633, %v1409
  %v1411 = vpop.f32.mrb[0].mxu0
  %1412 = vmatprep.mubr.f32.mxu0 0.0
  %1413 = vmatmul.mubr.f32.gmra.mrb[0].mxu0 %v655
  %v1414 = vpop.f32.mrb[0].mxu0
  %v1415 = vadd.f32 %v638, %v1414
  %v1416 = vpop.f32.mrb[0].mxu0
  %1417 = vmatprep.mubr.f32.mxu0 0.0
  %1418 = vmatmul.mubr.f32.gmra.mrb[0].mxu0 %v658
  %v1419 = vpop.f32.mrb[0].mxu0
  %v1420 = vadd.f32 %v643, %v1419
  %v1421 = vpop.f32.mrb[0].mxu0
  %1422 = vmatprep.mubr.f32.mxu0 0.0
  %1423 = vmatmul.mubr.f32.gmra.mrb[0].mxu0 %v661
  %v1424 = vpop.f32.mrb[0].mxu0
  %v1425 = vadd.f32 %v648, %v1424
  %v1426 = vpop.f32.mrb[0].mxu0
  %1427 = vdwg.mxu0
  %1428 = vmatprep.subr.mxu0 0.0
  %1429 = vmatpush1.msra.mxu0 %v594
  %1430 = vmatprep.subr.mxu0 0.0
  %1431 = vmatpush1.msra.mxu0 %v595
  %1432 = vmatprep.subr.mxu0 0.0
  %1433 = vmatpush1.msra.mxu0 %v596
  %1434 = vmatprep.subr.mxu0 0.0
  %1435 = vmatpush1.msra.mxu0 %v597
  %1436 = vmatprep.subr.mxu0 0.0
  %1437 = vmatpush1.msra.mxu0 0.0
  %1438 = vmatprep.subr.mxu0 0.0
  %1439 = vmatpush1.msra.mxu0 0.0
  %1440 = vmatprep.subr.mxu0 0.0
  %1441 = vmatpush1.msra.mxu0 0.0
  %1442 = vmatprep.subr.mxu0 0.0
  %1443 = vmatpush1.msra.mxu0 0.0
  %1444 = vmatprep.subr.mxu0 0.0
  %1445 = vmatpush1.msra.mxu0 0.0
  %1446 = vmatprep.subr.mxu0 0.0
  %1447 = vmatpush1.msra.mxu0 0.0
  %1448 = vmatprep.subr.mxu0 0.0
  %1449 = vmatpush1.msra.mxu0 0.0
  %1450 = vmatprep.subr.mxu0 0.0
  %1451 = vmatpush1.msra.mxu0 0.0
  %1452 = vmatprep.subr.mxu0 0.0
  %1453 = vmatpush1.msra.mxu0 0.0
  %1454 = vmatprep.subr.mxu0 0.0
  %1455 = vmatpush1.msra.mxu0 0.0
  %1456 = vmatprep.subr.mxu0 0.0
  %1457 = vmatpush1.msra.mxu0 0.0
  %1458 = vmatprep.subr.mxu0 0.0
  %1459 = vmatpush1.msra.mxu0 0.0
  %1460 = vmatprep.subr.mxu0 0.0
  %1461 = vmatpush1.msra.mxu0 0.0
  %1462 = vmatprep.subr.mxu0 0.0
  %1463 = vmatpush1.msra.mxu0 0.0
  %1464 = vmatprep.subr.mxu0 0.0
  %1465 = vmatpush1.msra.mxu0 0.0
  %1466 = vmatprep.subr.mxu0 0.0
  %1467 = vmatpush1.msra.mxu0 0.0
  %1468 = vmatprep.subr.mxu0 0.0
  %1469 = vmatpush1.msra.mxu0 0.0
  %1470 = vmatprep.subr.mxu0 0.0
  %1471 = vmatpush1.msra.mxu0 0.0
  %1472 = vmatprep.subr.mxu0 0.0
  %1473 = vmatpush1.msra.mxu0 0.0
  %1474 = vmatprep.subr.mxu0 0.0
  %1475 = vmatpush1.msra.mxu0 0.0
  %1476 = vmatprep.subr.mxu0 0.0
  %1477 = vmatpush1.msra.mxu0 0.0
  %1478 = vmatprep.subr.mxu0 0.0
  %1479 = vmatpush1.msra.mxu0 0.0
  %1480 = vmatprep.subr.mxu0 0.0
  %1481 = vmatpush1.msra.mxu0 0.0
  %1482 = vmatprep.subr.mxu0 0.0
  %1483 = vmatpush1.msra.mxu0 0.0
  %1484 = vmatprep.subr.mxu0 0.0
  %1485 = vmatpush1.msra.mxu0 0.0
  %1486 = vmatprep.subr.mxu0 0.0
  %1487 = vmatpush1.msra.mxu0 0.0
  %1488 = vmatprep.subr.mxu0 0.0
  %1489 = vmatpush1.msra.mxu0 0.0
  %1490 = vmatprep.subr.mxu0 0.0
  %1491 = vmatpush1.msra.mxu0 0.0
  %1492 = vmatprep.mubr.f32.mxu0 0.0
  %1493 = vmatmul.mubr.f32.gmra.mrb[0].mxu0 %v652
  %v1494 = vpop.f32.mrb[0].mxu0
  %v1495 = vadd.f32 %v633, %v1494
  %v1496 = vpop.f32.mrb[0].mxu0
  %1497 = vmatprep.mubr.f32.mxu0 0.0
  %1498 = vmatmul.mubr.f32.gmra.mrb[0].mxu0 %v655
  %v1499 = vpop.f32.mrb[0].mxu0
  %v1500 = vadd.f32 %v638, %v1499
  %v1501 = vpop.f32.mrb[0].mxu0
  %1502 = vmatprep.mubr.f32.mxu0 0.0
  %1503 = vmatmul.mubr.f32.gmra.mrb[0].mxu0 %v658
  %v1504 = vpop.f32.mrb[0].mxu0
  %v1505 = vadd.f32 %v643, %v1504
  %v1506 = vpop.f32.mrb[0].mxu0
  %1507 = vmatprep.mubr.f32.mxu0 0.0
  %1508 = vmatmul.mubr.f32.gmra.mrb[0].mxu0 %v661
  %v1509 = vpop.f32.mrb[0].mxu0
  %v1510 = vadd.f32 %v648, %v1509
  %v1511 = vpop.f32.mrb[0].mxu0
  %1512 = vdwg.mxu0
  %1513 = vmatprep.subr.mxu0 0.0
  %1514 = vmatpush1.msra.mxu0 %v598
  %1515 = vmatprep.subr.mxu0 0.0
  %1516 = vmatpush1.msra.mxu0 %v599
  %1517 = vmatprep.subr.mxu0 0.0
  %1518 = vmatpush1.msra.mxu0 %v600
  %1519 = vmatprep.subr.mxu0 0.0
  %1520 = vmatpush1.msra.mxu0 %v601
  %1521 = vmatprep.subr.mxu0 0.0
  %1522 = vmatpush1.msra.mxu0 0.0
  %1523 = vmatprep.subr.mxu0 0.0
  %1524 = vmatpush1.msra.mxu0 0.0
  %1525 = vmatprep.subr.mxu0 0.0
  %1526 = vmatpush1.msra.mxu0 0.0
  %1527 = vmatprep.subr.mxu0 0.0
  %1528 = vmatpush1.msra.mxu0 0.0
  %1529 = vmatprep.subr.mxu0 0.0
  %1530 = vmatpush1.msra.mxu0 0.0
  %1531 = vmatprep.subr.mxu0 0.0
  %1532 = vmatpush1.msra.mxu0 0.0
  %1533 = vmatprep.subr.mxu0 0.0
  %1534 = vmatpush1.msra.mxu0 0.0
  %1535 = vmatprep.subr.mxu0 0.0
  %1536 = vmatpush1.msra.mxu0 0.0
  %1537 = vmatprep.subr.mxu0 0.0
  %1538 = vmatpush1.msra.mxu0 0.0
  %1539 = vmatprep.subr.mxu0 0.0
  %1540 = vmatpush1.msra.mxu0 0.0
  %1541 = vmatprep.subr.mxu0 0.0
  %1542 = vmatpush1.msra.mxu0 0.0
  %1543 = vmatprep.subr.mxu0 0.0
  %1544 = vmatpush1.msra.mxu0 0.0
  %1545 = vmatprep.subr.mxu0 0.0
  %1546 = vmatpush1.msra.mxu0 0.0
  %1547 = vmatprep.subr.mxu0 0.0
  %1548 = vmatpush1.msra.mxu0 0.0
  %1549 = vmatprep.subr.mxu0 0.0
  %1550 = vmatpush1.msra.mxu0 0.0
  %1551 = vmatprep.subr.mxu0 0.0
  %1552 = vmatpush1.msra.mxu0 0.0
  %1553 = vmatprep.subr.mxu0 0.0
  %1554 = vmatpush1.msra.mxu0 0.0
  %1555 = vmatprep.subr.mxu0 0.0
  %1556 = vmatpush1.msra.mxu0 0.0
  %1557 = vmatprep.subr.mxu0 0.0
  %1558 = vmatpush1.msra.mxu0 0.0
  %1559 = vmatprep.subr.mxu0 0.0
  %1560 = vmatpush1.msra.mxu0 0.0
  %1561 = vmatprep.subr.mxu0 0.0
  %1562 = vmatpush1.msra.mxu0 0.0
  %1563 = vmatprep.subr.mxu0 0.0
  %1564 = vmatpush1.msra.mxu0 0.0
  %1565 = vmatprep.subr.mxu0 0.0
  %1566 = vmatpush1.msra.mxu0 0.0
  %1567 = vmatprep.subr.mxu0 0.0
  %1568 = vmatpush1.msra.mxu0 0.0
  %1569 = vmatprep.subr.mxu0 0.0
  %1570 = vmatpush1.msra.mxu0 0.0
  %1571 = vmatprep.subr.mxu0 0.0
  %1572 = vmatpush1.msra.mxu0 0.0
  %1573 = vmatprep.subr.mxu0 0.0
  %1574 = vmatpush1.msra.mxu0 0.0
  %1575 = vmatprep.subr.mxu0 0.0
  %1576 = vmatpush1.msra.mxu0 0.0
  %1577 = vmatprep.mubr.f32.mxu0 0.0
  %1578 = vmatmul.mubr.f32.gmra.mrb[0].mxu0 %v652
  %v1579 = vpop.f32.mrb[0].mxu0
  %v1580 = vadd.f32 %v633, %v1579
  %v1581 = vpop.f32.mrb[0].mxu0
  %1582 = vmatprep.mubr.f32.mxu0 0.0
  %1583 = vmatmul.mubr.f32.gmra.mrb[0].mxu0 %v655
  %v1584 = vpop.f32.mrb[0].mxu0
  %v1585 = vadd.f32 %v638, %v1584
  %v1586 = vpop.f32.mrb[0].mxu0
  %1587 = vmatprep.mubr.f32.mxu0 0.0
  %1588 = vmatmul.mubr.f32.gmra.mrb[0].mxu0 %v658
  %v1589 = vpop.f32.mrb[0].mxu0
  %v1590 = vadd.f32 %v643, %v1589
  %v1591 = vpop.f32.mrb[0].mxu0
  %1592 = vmatprep.mubr.f32.mxu0 0.0
  %1593 = vmatmul.mubr.f32.gmra.mrb[0].mxu0 %v661
  %v1594 = vpop.f32.mrb[0].mxu0
  %v1595 = vadd.f32 %v648, %v1594
  %v1596 = vpop.f32.mrb[0].mxu0
  %1597 = vdwg.mxu0
  %1598 = vmatprep.subr.mxu0 0.0
  %1599 = vmatpush1.msra.mxu0 %v602
  %1600 = vmatprep.subr.mxu0 0.0
  %1601 = vmatpush1.msra.mxu0 %v603
  %1602 = vmatprep.subr.mxu0 0.0
  %1603 = vmatpush1.msra.mxu0 %v604
  %1604 = vmatprep.subr.mxu0 0.0
  %1605 = vmatpush1.msra.mxu0 %v605
  %1606 = vmatprep.subr.mxu0 0.0
  %1607 = vmatpush1.msra.mxu0 0.0
  %1608 = vmatprep.subr.mxu0 0.0
  %1609 = vmatpush1.msra.mxu0 0.0
  %1610 = vmatprep.subr.mxu0 0.0
  %1611 = vmatpush1.msra.mxu0 0.0
  %1612 = vmatprep.subr.mxu0 0.0
  %1613 = vmatpush1.msra.mxu0 0.0
  %1614 = vmatprep.subr.mxu0 0.0
  %1615 = vmatpush1.msra.mxu0 0.0
  %1616 = vmatprep.subr.mxu0 0.0
  %1617 = vmatpush1.msra.mxu0 0.0
  %1618 = vmatprep.subr.mxu0 0.0
  %1619 = vmatpush1.msra.mxu0 0.0
  %1620 = vmatprep.subr.mxu0 0.0
  %1621 = vmatpush1.msra.mxu0 0.0
  %1622 = vmatprep.subr.mxu0 0.0
  %1623 = vmatpush1.msra.mxu0 0.0
  %1624 = vmatprep.subr.mxu0 0.0
  %1625 = vmatpush1.msra.mxu0 0.0
  %1626 = vmatprep.subr.mxu0 0.0
  %1627 = vmatpush1.msra.mxu0 0.0
  %1628 = vmatprep.subr.mxu0 0.0
  %1629 = vmatpush1.msra.mxu0 0.0
  %1630 = vmatprep.subr.mxu0 0.0
  %1631 = vmatpush1.msra.mxu0 0.0
  %1632 = vmatprep.subr.mxu0 0.0
  %1633 = vmatpush1.msra.mxu0 0.0
  %1634 = vmatprep.subr.mxu0 0.0
  %1635 = vmatpush1.msra.mxu0 0.0
  %1636 = vmatprep.subr.mxu0 0.0
  %1637 = vmatpush1.msra.mxu0 0.0
  %1638 = vmatprep.subr.mxu0 0.0
  %1639 = vmatpush1.msra.mxu0 0.0
  %1640 = vmatprep.subr.mxu0 0.0
  %1641 = vmatpush1.msra.mxu0 0.0
  %1642 = vmatprep.subr.mxu0 0.0
  %1643 = vmatpush1.msra.mxu0 0.0
  %1644 = vmatprep.subr.mxu0 0.0
  %1645 = vmatpush1.msra.mxu0 0.0
  %1646 = vmatprep.subr.mxu0 0.0
  %1647 = vmatpush1.msra.mxu0 0.0
  %1648 = vmatprep.subr.mxu0 0.0
  %1649 = vmatpush1.msra.mxu0 0.0
  %1650 = vmatprep.subr.mxu0 0.0
  %1651 = vmatpush1.msra.mxu0 0.0
  %1652 = vmatprep.subr.mxu0 0.0
  %1653 = vmatpush1.msra.mxu0 0.0
  %1654 = vmatprep.subr.mxu0 0.0
  %1655 = vmatpush1.msra.mxu0 0.0
  %1656 = vmatprep.subr.mxu0 0.0
  %1657 = vmatpush1.msra.mxu0 0.0
  %1658 = vmatprep.subr.mxu0 0.0
  %1659 = vmatpush1.msra.mxu0 0.0
  %1660 = vmatprep.subr.mxu0 0.0
  %1661 = vmatpush1.msra.mxu0 0.0
  %1662 = vmatprep.mubr.f32.mxu0 0.0
  %1663 = vmatmul.mubr.f32.gmra.mrb[0].mxu0 %v652
  %v1664 = vpop.f32.mrb[0].mxu0
  %v1665 = vadd.f32 %v633, %v1664
  %v1666 = vpop.f32.mrb[0].mxu0
  %1667 = vmatprep.mubr.f32.mxu0 0.0
  %1668 = vmatmul.mubr.f32.gmra.mrb[0].mxu0 %v655
  %v1669 = vpop.f32.mrb[0].mxu0
  %v1670 = vadd.f32 %v638, %v1669
  %v1671 = vpop.f32.mrb[0].mxu0
  %1672 = vmatprep.mubr.f32.mxu0 0.0
  %1673 = vmatmul.mubr.f32.gmra.mrb[0].mxu0 %v658
  %v1674 = vpop.f32.mrb[0].mxu0
  %v1675 = vadd.f32 %v643, %v1674
  %v1676 = vpop.f32.mrb[0].mxu0
  %1677 = vmatprep.mubr.f32.mxu0 0.0
  %1678 = vmatmul.mubr.f32.gmra.mrb[0].mxu0 %v661
  %v1679 = vpop.f32.mrb[0].mxu0
  %v1680 = vadd.f32 %v648, %v1679
  %v1681 = vpop.f32.mrb[0].mxu0
  %1682 = vdwg.mxu0
  %1683 = vmatprep.subr.mxu0 0.0
  %1684 = vmatpush1.msra.mxu0 %v606
  %1685 = vmatprep.subr.mxu0 0.0
  %1686 = vmatpush1.msra.mxu0 %v607
  %1687 = vmatprep.subr.mxu0 0.0
  %1688 = vmatpush1.msra.mxu0 %v608
  %1689 = vmatprep.subr.mxu0 0.0
  %1690 = vmatpush1.msra.mxu0 %v609
  %1691 = vmatprep.subr.mxu0 0.0
  %1692 = vmatpush1.msra.mxu0 0.0
  %1693 = vmatprep.subr.mxu0 0.0
  %1694 = vmatpush1.msra.mxu0 0.0
  %1695 = vmatprep.subr.mxu0 0.0
  %1696 = vmatpush1.msra.mxu0 0.0
  %1697 = vmatprep.subr.mxu0 0.0
  %1698 = vmatpush1.msra.mxu0 0.0
  %1699 = vmatprep.subr.mxu0 0.0
  %1700 = vmatpush1.msra.mxu0 0.0
  %1701 = vmatprep.subr.mxu0 0.0
  %1702 = vmatpush1.msra.mxu0 0.0
  %1703 = vmatprep.subr.mxu0 0.0
  %1704 = vmatpush1.msra.mxu0 0.0
  %1705 = vmatprep.subr.mxu0 0.0
  %1706 = vmatpush1.msra.mxu0 0.0
  %1707 = vmatprep.subr.mxu0 0.0
  %1708 = vmatpush1.msra.mxu0 0.0
  %1709 = vmatprep.subr.mxu0 0.0
  %1710 = vmatpush1.msra.mxu0 0.0
  %1711 = vmatprep.subr.mxu0 0.0
  %1712 = vmatpush1.msra.mxu0 0.0
  %1713 = vmatprep.subr.mxu0 0.0
  %1714 = vmatpush1.msra.mxu0 0.0
  %1715 = vmatprep.subr.mxu0 0.0
  %1716 = vmatpush1.msra.mxu0 0.0
  %1717 = vmatprep.subr.mxu0 0.0
  %1718 = vmatpush1.msra.mxu0 0.0
  %1719 = vmatprep.subr.mxu0 0.0
  %1720 = vmatpush1.msra.mxu0 0.0
  %1721 = vmatprep.subr.mxu0 0.0
  %1722 = vmatpush1.msra.mxu0 0.0
  %1723 = vmatprep.subr.mxu0 0.0
  %1724 = vmatpush1.msra.mxu0 0.0
  %1725 = vmatprep.subr.mxu0 0.0
  %1726 = vmatpush1.msra.mxu0 0.0
  %1727 = vmatprep.subr.mxu0 0.0
  %1728 = vmatpush1.msra.mxu0 0.0
  %1729 = vmatprep.subr.mxu0 0.0
  %1730 = vmatpush1.msra.mxu0 0.0
  %1731 = vmatprep.subr.mxu0 0.0
  %1732 = vmatpush1.msra.mxu0 0.0
  %1733 = vmatprep.subr.mxu0 0.0
  %1734 = vmatpush1.msra.mxu0 0.0
  %1735 = vmatprep.subr.mxu0 0.0
  %1736 = vmatpush1.msra.mxu0 0.0
  %1737 = vmatprep.subr.mxu0 0.0
  %1738 = vmatpush1.msra.mxu0 0.0
  %1739 = vmatprep.subr.mxu0 0.0
  %1740 = vmatpush1.msra.mxu0 0.0
  %1741 = vmatprep.subr.mxu0 0.0
  %1742 = vmatpush1.msra.mxu0 0.0
  %1743 = vmatprep.subr.mxu0 0.0
  %1744 = vmatpush1.msra.mxu0 0.0
  %1745 = vmatprep.subr.mxu0 0.0
  %1746 = vmatpush1.msra.mxu0 0.0
  %1747 = vmatprep.mubr.f32.mxu0 0.0
  %1748 = vmatmul.mubr.f32.gmra.mrb[0].mxu0 %v652
  %v1749 = vpop.f32.mrb[0].mxu0
  %v1750 = vadd.f32 %v633, %v1749
  %v1751 = vpop.f32.mrb[0].mxu0
  %1752 = vmatprep.mubr.f32.mxu0 0.0
  %1753 = vmatmul.mubr.f32.gmra.mrb[0].mxu0 %v655
  %v1754 = vpop.f32.mrb[0].mxu0
  %v1755 = vadd.f32 %v638, %v1754
  %v1756 = vpop.f32.mrb[0].mxu0
  %1757 = vmatprep.mubr.f32.mxu0 0.0
  %1758 = vmatmul.mubr.f32.gmra.mrb[0].mxu0 %v658
  %v1759 = vpop.f32.mrb[0].mxu0
  %v1760 = vadd.f32 %v643, %v1759
  %v1761 = vpop.f32.mrb[0].mxu0
  %1762 = vmatprep.mubr.f32.mxu0 0.0
  %1763 = vmatmul.mubr.f32.gmra.mrb[0].mxu0 %v661
  %v1764 = vpop.f32.mrb[0].mxu0
  %v1765 = vadd.f32 %v648, %v1764
  %v1766 = vpop.f32.mrb[0].mxu0
  %1767 = vdwg.mxu0
  %1768 = vmatprep.subr.mxu0 0.0
  %1769 = vmatpush1.msra.mxu0 %v610
  %1770 = vmatprep.subr.mxu0 0.0
  %1771 = vmatpush1.msra.mxu0 %v611
  %1772 = vmatprep.subr.mxu0 0.0
  %1773 = vmatpush1.msra.mxu0 %v612
  %1774 = vmatprep.subr.mxu0 0.0
  %1775 = vmatpush1.msra.mxu0 %v613
  %1776 = vmatprep.subr.mxu0 0.0
  %1777 = vmatpush1.msra.mxu0 0.0
  %1778 = vmatprep.subr.mxu0 0.0
  %1779 = vmatpush1.msra.mxu0 0.0
  %1780 = vmatprep.subr.mxu0 0.0
  %1781 = vmatpush1.msra.mxu0 0.0
  %1782 = vmatprep.subr.mxu0 0.0
  %1783 = vmatpush1.msra.mxu0 0.0
  %1784 = vmatprep.subr.mxu0 0.0
  %1785 = vmatpush1.msra.mxu0 0.0
  %1786 = vmatprep.subr.mxu0 0.0
  %1787 = vmatpush1.msra.mxu0 0.0
  %1788 = vmatprep.subr.mxu0 0.0
  %1789 = vmatpush1.msra.mxu0 0.0
  %1790 = vmatprep.subr.mxu0 0.0
  %1791 = vmatpush1.msra.mxu0 0.0
  %1792 = vmatprep.subr.mxu0 0.0
  %1793 = vmatpush1.msra.mxu0 0.0
  %1794 = vmatprep.subr.mxu0 0.0
  %1795 = vmatpush1.msra.mxu0 0.0
  %1796 = vmatprep.subr.mxu0 0.0
  %1797 = vmatpush1.msra.mxu0 0.0
  %1798 = vmatprep.subr.mxu0 0.0
  %1799 = vmatpush1.msra.mxu0 0.0
  %1800 = vmatprep.subr.mxu0 0.0
  %1801 = vmatpush1.msra.mxu0 0.0
  %1802 = vmatprep.subr.mxu0 0.0
  %1803 = vmatpush1.msra.mxu0 0.0
  %1804 = vmatprep.subr.mxu0 0.0
  %1805 = vmatpush1.msra.mxu0 0.0
  %1806 = vmatprep.subr.mxu0 0.0
  %1807 = vmatpush1.msra.mxu0 0.0
  %1808 = vmatprep.subr.mxu0 0.0
  %1809 = vmatpush1.msra.mxu0 0.0
  %1810 = vmatprep.subr.mxu0 0.0
  %1811 = vmatpush1.msra.mxu0 0.0
  %1812 = vmatprep.subr.mxu0 0.0
  %1813 = vmatpush1.msra.mxu0 0.0
  %1814 = vmatprep.subr.mxu0 0.0
  %1815 = vmatpush1.msra.mxu0 0.0
  %1816 = vmatprep.subr.mxu0 0.0
  %1817 = vmatpush1.msra.mxu0 0.0
  %1818 = vmatprep.subr.mxu0 0.0
  %1819 = vmatpush1.msra.mxu0 0.0
  %1820 = vmatprep.subr.mxu0 0.0
  %1821 = vmatpush1.msra.mxu0 0.0
  %1822 = vmatprep.subr.mxu0 0.0
  %1823 = vmatpush1.msra.mxu0 0.0
  %1824 = vmatprep.subr.mxu0 0.0
  %1825 = vmatpush1.msra.mxu0 0.0
  %1826 = vmatprep.subr.mxu0 0.0
  %1827 = vmatpush1.msra.mxu0 0.0
  %1828 = vmatprep.subr.mxu0 0.0
  %1829 = vmatpush1.msra.mxu0 0.0
  %1830 = vmatprep.subr.mxu0 0.0
  %1831 = vmatpush1.msra.mxu0 0.0
  %1832 = vmatprep.mubr.f32.mxu0 0.0
  %1833 = vmatmul.mubr.f32.gmra.mrb[0].mxu0 %v652
  %v1834 = vpop.f32.mrb[0].mxu0
  %v1835 = vadd.f32 %v633, %v1834
  %v1836 = vpop.f32.mrb[0].mxu0
  %1837 = vmatprep.mubr.f32.mxu0 0.0
  %1838 = vmatmul.mubr.f32.gmra.mrb[0].mxu0 %v655
  %v1839 = vpop.f32.mrb[0].mxu0
  %v1840 = vadd.f32 %v638, %v1839
  %v1841 = vpop.f32.mrb[0].mxu0
  %1842 = vmatprep.mubr.f32.mxu0 0.0
  %1843 = vmatmul.mubr.f32.gmra.mrb[0].mxu0 %v658
  %v1844 = vpop.f32.mrb[0].mxu0
  %v1845 = vadd.f32 %v643, %v1844
  %v1846 = vpop.f32.mrb[0].mxu0
  %1847 = vmatprep.mubr.f32.mxu0 0.0
  %1848 = vmatmul.mubr.f32.gmra.mrb[0].mxu0 %v661
  %v1849 = vpop.f32.mrb[0].mxu0
  %v1850 = vadd.f32 %v648, %v1849
  %v1851 = vpop.f32.mrb[0].mxu0
  %1852 = vdwg.mxu0
  %1853 = vmatprep.subr.mxu0 0.0
  %1854 = vmatpush1.msra.mxu0 %v614
  %1855 = vmatprep.subr.mxu0 0.0
  %1856 = vmatpush1.msra.mxu0 %v615
  %1857 = vmatprep.subr.mxu0 0.0
  %1858 = vmatpush1.msra.mxu0 %v616
  %1859 = vmatprep.subr.mxu0 0.0
  %1860 = vmatpush1.msra.mxu0 %v617
  %1861 = vmatprep.subr.mxu0 0.0
  %1862 = vmatpush1.msra.mxu0 0.0
  %1863 = vmatprep.subr.mxu0 0.0
  %1864 = vmatpush1.msra.mxu0 0.0
  %1865 = vmatprep.subr.mxu0 0.0
  %1866 = vmatpush1.msra.mxu0 0.0
  %1867 = vmatprep.subr.mxu0 0.0
  %1868 = vmatpush1.msra.mxu0 0.0
  %1869 = vmatprep.subr.mxu0 0.0
  %1870 = vmatpush1.msra.mxu0 0.0
  %1871 = vmatprep.subr.mxu0 0.0
  %1872 = vmatpush1.msra.mxu0 0.0
  %1873 = vmatprep.subr.mxu0 0.0
  %1874 = vmatpush1.msra.mxu0 0.0
  %1875 = vmatprep.subr.mxu0 0.0
  %1876 = vmatpush1.msra.mxu0 0.0
  %1877 = vmatprep.subr.mxu0 0.0
  %1878 = vmatpush1.msra.mxu0 0.0
  %1879 = vmatprep.subr.mxu0 0.0
  %1880 = vmatpush1.msra.mxu0 0.0
  %1881 = vmatprep.subr.mxu0 0.0
  %1882 = vmatpush1.msra.mxu0 0.0
  %1883 = vmatprep.subr.mxu0 0.0
  %1884 = vmatpush1.msra.mxu0 0.0
  %1885 = vmatprep.subr.mxu0 0.0
  %1886 = vmatpush1.msra.mxu0 0.0
  %1887 = vmatprep.subr.mxu0 0.0
  %1888 = vmatpush1.msra.mxu0 0.0
  %1889 = vmatprep.subr.mxu0 0.0
  %1890 = vmatpush1.msra.mxu0 0.0
  %1891 = vmatprep.subr.mxu0 0.0
  %1892 = vmatpush1.msra.mxu0 0.0
  %1893 = vmatprep.subr.mxu0 0.0
  %1894 = vmatpush1.msra.mxu0 0.0
  %1895 = vmatprep.subr.mxu0 0.0
  %1896 = vmatpush1.msra.mxu0 0.0
  %1897 = vmatprep.subr.mxu0 0.0
  %1898 = vmatpush1.msra.mxu0 0.0
  %1899 = vmatprep.subr.mxu0 0.0
  %1900 = vmatpush1.msra.mxu0 0.0
  %1901 = vmatprep.subr.mxu0 0.0
  %1902 = vmatpush1.msra.mxu0 0.0
  %1903 = vmatprep.subr.mxu0 0.0
  %1904 = vmatpush1.msra.mxu0 0.0
  %1905 = vmatprep.subr.mxu0 0.0
  %1906 = vmatpush1.msra.mxu0 0.0
  %1907 = vmatprep.subr.mxu0 0.0
  %1908 = vmatpush1.msra.mxu0 0.0
  %1909 = vmatprep.subr.mxu0 0.0
  %1910 = vmatpush1.msra.mxu0 0.0
  %1911 = vmatprep.subr.mxu0 0.0
  %1912 = vmatpush1.msra.mxu0 0.0
  %1913 = vmatprep.subr.mxu0 0.0
  %1914 = vmatpush1.msra.mxu0 0.0
  %1915 = vmatprep.subr.mxu0 0.0
  %1916 = vmatpush1.msra.mxu0 0.0
  %1917 = vmatprep.mubr.f32.mxu0 0.0
  %1918 = vmatmul.mubr.f32.gmra.mrb[0].mxu0 %v652
  %v1919 = vpop.f32.mrb[0].mxu0
  %v1920 = vadd.f32 %v633, %v1919
  %v1921 = vpop.f32.mrb[0].mxu0
  %1922 = vmatprep.mubr.f32.mxu0 0.0
  %1923 = vmatmul.mubr.f32.gmra.mrb[0].mxu0 %v655
  %v1924 = vpop.f32.mrb[0].mxu0
  %v1925 = vadd.f32 %v638, %v1924
  %v1926 = vpop.f32.mrb[0].mxu0
  %1927 = vmatprep.mubr.f32.mxu0 0.0
  %1928 = vmatmul.mubr.f32.gmra.mrb[0].mxu0 %v658
  %v1929 = vpop.f32.mrb[0].mxu0
  %v1930 = vadd.f32 %v643, %v1929
  %v1931 = vpop.f32.mrb[0].mxu0
  %1932 = vmatprep.mubr.f32.mxu0 0.0
  %1933 = vmatmul.mubr.f32.gmra.mrb[0].mxu0 %v661
  %v1934 = vpop.f32.mrb[0].mxu0
  %v1935 = vadd.f32 %v648, %v1934
  %v1936 = vpop.f32.mrb[0].mxu0
  %1937 = vdwg.mxu0
  %1938 = vmatprep.subr.mxu0 0.0
  %1939 = vmatpush1.msra.mxu0 %v618
  %1940 = vmatprep.subr.mxu0 0.0
  %1941 = vmatpush1.msra.mxu0 %v619
  %1942 = vmatprep.subr.mxu0 0.0
  %1943 = vmatpush1.msra.mxu0 %v620
  %1944 = vmatprep.subr.mxu0 0.0
  %1945 = vmatpush1.msra.mxu0 %v621
  %1946 = vmatprep.subr.mxu0 0.0
  %1947 = vmatpush1.msra.mxu0 0.0
  %1948 = vmatprep.subr.mxu0 0.0
  %1949 = vmatpush1.msra.mxu0 0.0
  %1950 = vmatprep.subr.mxu0 0.0
  %1951 = vmatpush1.msra.mxu0 0.0
  %1952 = vmatprep.subr.mxu0 0.0
  %1953 = vmatpush1.msra.mxu0 0.0
  %1954 = vmatprep.subr.mxu0 0.0
  %1955 = vmatpush1.msra.mxu0 0.0
  %1956 = vmatprep.subr.mxu0 0.0
  %1957 = vmatpush1.msra.mxu0 0.0
  %1958 = vmatprep.subr.mxu0 0.0
  %1959 = vmatpush1.msra.mxu0 0.0
  %1960 = vmatprep.subr.mxu0 0.0
  %1961 = vmatpush1.msra.mxu0 0.0
  %1962 = vmatprep.subr.mxu0 0.0
  %1963 = vmatpush1.msra.mxu0 0.0
  %1964 = vmatprep.subr.mxu0 0.0
  %1965 = vmatpush1.msra.mxu0 0.0
  %1966 = vmatprep.subr.mxu0 0.0
  %1967 = vmatpush1.msra.mxu0 0.0
  %1968 = vmatprep.subr.mxu0 0.0
  %1969 = vmatpush1.msra.mxu0 0.0
  %1970 = vmatprep.subr.mxu0 0.0
  %1971 = vmatpush1.msra.mxu0 0.0
  %1972 = vmatprep.subr.mxu0 0.0
  %1973 = vmatpush1.msra.mxu0 0.0
  %1974 = vmatprep.subr.mxu0 0.0
  %1975 = vmatpush1.msra.mxu0 0.0
  %1976 = vmatprep.subr.mxu0 0.0
  %1977 = vmatpush1.msra.mxu0 0.0
  %1978 = vmatprep.subr.mxu0 0.0
  %1979 = vmatpush1.msra.mxu0 0.0
  %1980 = vmatprep.subr.mxu0 0.0
  %1981 = vmatpush1.msra.mxu0 0.0
  %1982 = vmatprep.subr.mxu0 0.0
  %1983 = vmatpush1.msra.mxu0 0.0
  %1984 = vmatprep.subr.mxu0 0.0
  %1985 = vmatpush1.msra.mxu0 0.0
  %1986 = vmatprep.subr.mxu0 0.0
  %1987 = vmatpush1.msra.mxu0 0.0
  %1988 = vmatprep.subr.mxu0 0.0
  %1989 = vmatpush1.msra.mxu0 0.0
  %1990 = vmatprep.subr.mxu0 0.0
  %1991 = vmatpush1.msra.mxu0 0.0
  %1992 = vmatprep.subr.mxu0 0.0
  %1993 = vmatpush1.msra.mxu0 0.0
  %1994 = vmatprep.subr.mxu0 0.0
  %1995 = vmatpush1.msra.mxu0 0.0
  %1996 = vmatprep.subr.mxu0 0.0
  %1997 = vmatpush1.msra.mxu0 0.0
  %1998 = vmatprep.subr.mxu0 0.0
  %1999 = vmatpush1.msra.mxu0 0.0
  %2000 = vmatprep.subr.mxu0 0.0
  %2001 = vmatpush1.msra.mxu0 0.0
  %2002 = vmatprep.mubr.f32.mxu0 0.0
  %2003 = vmatmul.mubr.f32.gmra.mrb[0].mxu0 %v652
  %v2004 = vpop.f32.mrb[0].mxu0
  %v2005 = vadd.f32 %v633, %v2004
  %v2006 = vpop.f32.mrb[0].mxu0
  %2007 = vmatprep.mubr.f32.mxu0 0.0
  %2008 = vmatmul.mubr.f32.gmra.mrb[0].mxu0 %v655
  %v2009 = vpop.f32.mrb[0].mxu0
  %v2010 = vadd.f32 %v638, %v2009
  %v2011 = vpop.f32.mrb[0].mxu0
  %2012 = vmatprep.mubr.f32.mxu0 0.0
  %2013 = vmatmul.mubr.f32.gmra.mrb[0].mxu0 %v658
  %v2014 = vpop.f32.mrb[0].mxu0
  %v2015 = vadd.f32 %v643, %v2014
  %v2016 = vpop.f32.mrb[0].mxu0
  %2017 = vmatprep.mubr.f32.mxu0 0.0
  %2018 = vmatmul.mubr.f32.gmra.mrb[0].mxu0 %v661
  %v2019 = vpop.f32.mrb[0].mxu0
  %v2020 = vadd.f32 %v648, %v2019
  %v2021 = vpop.f32.mrb[0].mxu0
  %2022 = vdwg.mxu0
  %v2023 = vtanh.pop %v730
  %v2024 = vtanh.pop %v735
  %v2025 = vtanh.pop %v740
  %v2026 = vtanh.pop %v745
  %v2027 = vtanh.pop %v815
  %v2028 = vtanh.pop %v820
  %v2029 = vtanh.pop %v825
  %v2030 = vtanh.pop %v830
  %v2031 = vtanh.pop %v900
  %v2032 = vtanh.pop %v905
  %v2033 = vtanh.pop %v910
  %v2034 = vtanh.pop %v915
  %v2035 = vtanh.pop %v985
  %v2036 = vtanh.pop %v990
  %v2037 = vtanh.pop %v995
  %v2038 = vtanh.pop %v1000
  %v2039 = vtanh.pop %v1070
  %v2040 = vtanh.pop %v1075
  %v2041 = vtanh.pop %v1080
  %v2042 = vtanh.pop %v1085
  %v2043 = vtanh.pop %v1155
  %v2044 = vtanh.pop %v1160
  %v2045 = vtanh.pop %v1165
  %v2046 = vtanh.pop %v1170
  %v2047 = vtanh.pop %v1240
  %v2048 = vtanh.pop %v1245
  %v2049 = vtanh.pop %v1250
  %v2050 = vtanh.pop %v1255
  %v2051 = vtanh.pop %v1325
  %v2052 = vtanh.pop %v1330
  %v2053 = vtanh.pop %v1335
  %v2054 = vtanh.pop %v1340
  %v2055 = vtanh.pop %v1410
  %v2056 = vtanh.pop %v1415
  %v2057 = vtanh.pop %v1420
  %v2058 = vtanh.pop %v1425
  %v2059 = vtanh.pop %v1495
  %v2060 = vtanh.pop %v1500
  %v2061 = vtanh.pop %v1505
  %v2062 = vtanh.pop %v1510
  %v2063 = vtanh.pop %v1580
  %v2064 = vtanh.pop %v1585
  %v2065 = vtanh.pop %v1590
  %v2066 = vtanh.pop %v1595
  %v2067 = vtanh.pop %v1665
  %v2068 = vtanh.pop %v1670
  %v2069 = vtanh.pop %v1675
  %v2070 = vtanh.pop %v1680
  %v2071 = vtanh.pop %v1750
  %v2072 = vtanh.pop %v1755
  %v2073 = vtanh.pop %v1760
  %v2074 = vtanh.pop %v1765
  %v2075 = vtanh.pop %v1835
  %v2076 = vtanh.pop %v1840
  %v2077 = vtanh.pop %v1845
  %v2078 = vtanh.pop %v1850
  %v2079 = vtanh.pop %v1920
  %v2080 = vtanh.pop %v1925
  %v2081 = vtanh.pop %v1930
  %v2082 = vtanh.pop %v1935
  %v2083 = vtanh.pop %v2005
  %v2084 = vtanh.pop %v2010
  %v2085 = vtanh.pop %v2015
  %v2086 = vtanh.pop %v2020
  %v2087 = vld [vmem:[%s7] sm:$0xff]
  %v2088 = vld [vmem:[%s7 + $0x8] sm:$0xff]
  %v2089 = vld [vmem:[%s7 + $0x10] sm:$0xff]
  %v2090 = vld [vmem:[%s7 + $0x18] sm:$0xff]
  %2092 = vset.pattern.permute.xlu0 0
  %2093 = vperm.xlu0 %2092, %v2087
  %v2094 = vpop.permute.xlu0 %2093
  %2097 = vset.pattern.permute.xlu0 0
  %2098 = vperm.xlu0 %2097, %v2088
  %v2099 = vpop.permute.xlu0 %2098
  %2102 = vset.pattern.permute.xlu0 0
  %2103 = vperm.xlu0 %2102, %v2089
  %v2104 = vpop.permute.xlu0 %2103
  %2107 = vset.pattern.permute.xlu0 0
  %2108 = vperm.xlu0 %2107, %v2090
  %v2109 = vpop.permute.xlu0 %2108
  %v2111 = vmul.f32 %v2039, %v2094
  %v2112 = vmul.f32 %v2040, %v2099
  %v2113 = vmul.f32 %v2041, %v2104
  %v2114 = vmul.f32 %v2042, %v2109
  %v2115 = vmul.f32 %v2043, %v2094
  %v2116 = vmul.f32 %v2044, %v2099
  %v2117 = vmul.f32 %v2045, %v2104
  %v2118 = vmul.f32 %v2046, %v2109
  %v2119 = vmul.f32 %v2047, %v2094
  %v2120 = vmul.f32 %v2048, %v2099
  %v2121 = vmul.f32 %v2049, %v2104
  %v2122 = vmul.f32 %v2050, %v2109
  %v2123 = vmul.f32 %v2051, %v2094
  %v2124 = vmul.f32 %v2052, %v2099
  %v2125 = vmul.f32 %v2053, %v2104
  %v2126 = vmul.f32 %v2054, %v2109
  %v2127 = vadd.f32 %v2111, %v2112
  %v2128 = vadd.f32 %v2127, %v2113
  %v2129 = vadd.f32 %v2128, %v2114
  %v2130 = vrot.slane %v2129, 4
  %v2131 = vadd.f32 %v2129, %v2130
  %v2132 = vrot.slane %v2131, 2
  %v2133 = vadd.f32 %v2131, %v2132
  %v2134 = vrot.slane %v2133, 1
  %v2135 = vadd.f32 %v2133, %v2134
  %v2136 = vadd.f32 %v2115, %v2116
  %v2137 = vadd.f32 %v2136, %v2117
  %v2138 = vadd.f32 %v2137, %v2118
  %v2139 = vrot.slane %v2138, 4
  %v2140 = vadd.f32 %v2138, %v2139
  %v2141 = vrot.slane %v2140, 2
  %v2142 = vadd.f32 %v2140, %v2141
  %v2143 = vrot.slane %v2142, 1
  %v2144 = vadd.f32 %v2142, %v2143
  %v2145 = vadd.f32 %v2119, %v2120
  %v2146 = vadd.f32 %v2145, %v2121
  %v2147 = vadd.f32 %v2146, %v2122
  %v2148 = vrot.slane %v2147, 4
  %v2149 = vadd.f32 %v2147, %v2148
  %v2150 = vrot.slane %v2149, 2
  %v2151 = vadd.f32 %v2149, %v2150
  %v2152 = vrot.slane %v2151, 1
  %v2153 = vadd.f32 %v2151, %v2152
  %v2154 = vadd.f32 %v2123, %v2124
  %v2155 = vadd.f32 %v2154, %v2125
  %v2156 = vadd.f32 %v2155, %v2126
  %v2157 = vrot.slane %v2156, 4
  %v2158 = vadd.f32 %v2156, %v2157
  %v2159 = vrot.slane %v2158, 2
  %v2160 = vadd.f32 %v2158, %v2159
  %v2161 = vrot.slane %v2160, 1
  %v2162 = vadd.f32 %v2160, %v2161
  %v2163 = vmul.f32 %v2023, %v2094
  %v2164 = vmul.f32 %v2024, %v2099
  %v2165 = vmul.f32 %v2025, %v2104
  %v2166 = vmul.f32 %v2026, %v2109
  %v2167 = vmul.f32 %v2027, %v2094
  %v2168 = vmul.f32 %v2028, %v2099
  %v2169 = vmul.f32 %v2029, %v2104
  %v2170 = vmul.f32 %v2030, %v2109
  %v2171 = vmul.f32 %v2031, %v2094
  %v2172 = vmul.f32 %v2032, %v2099
  %v2173 = vmul.f32 %v2033, %v2104
  %v2174 = vmul.f32 %v2034, %v2109
  %v2175 = vmul.f32 %v2035, %v2094
  %v2176 = vmul.f32 %v2036, %v2099
  %v2177 = vmul.f32 %v2037, %v2104
  %v2178 = vmul.f32 %v2038, %v2109
  %v2179 = vadd.f32 %v2163, %v2164
  %v2180 = vadd.f32 %v2179, %v2165
  %v2181 = vadd.f32 %v2180, %v2166
  %v2182 = vrot.slane %v2181, 4
  %v2183 = vadd.f32 %v2181, %v2182
  %v2184 = vrot.slane %v2183, 2
  %v2185 = vadd.f32 %v2183, %v2184
  %v2186 = vrot.slane %v2185, 1
  %v2187 = vadd.f32 %v2185, %v2186
  %v2188 = vadd.f32 %v2167, %v2168
  %v2189 = vadd.f32 %v2188, %v2169
  %v2190 = vadd.f32 %v2189, %v2170
  %v2191 = vrot.slane %v2190, 4
  %v2192 = vadd.f32 %v2190, %v2191
  %v2193 = vrot.slane %v2192, 2
  %v2194 = vadd.f32 %v2192, %v2193
  %v2195 = vrot.slane %v2194, 1
  %v2196 = vadd.f32 %v2194, %v2195
  %v2197 = vadd.f32 %v2171, %v2172
  %v2198 = vadd.f32 %v2197, %v2173
  %v2199 = vadd.f32 %v2198, %v2174
  %v2200 = vrot.slane %v2199, 4
  %v2201 = vadd.f32 %v2199, %v2200
  %v2202 = vrot.slane %v2201, 2
  %v2203 = vadd.f32 %v2201, %v2202
  %v2204 = vrot.slane %v2203, 1
  %v2205 = vadd.f32 %v2203, %v2204
  %v2206 = vadd.f32 %v2175, %v2176
  %v2207 = vadd.f32 %v2206, %v2177
  %v2208 = vadd.f32 %v2207, %v2178
  %v2209 = vrot.slane %v2208, 4
  %v2210 = vadd.f32 %v2208, %v2209
  %v2211 = vrot.slane %v2210, 2
  %v2212 = vadd.f32 %v2210, %v2211
  %v2213 = vrot.slane %v2212, 1
  %v2214 = vadd.f32 %v2212, %v2213
  %v2215 = vsub.f32 %v2135, %v2187
  %v2216 = vsub.f32 %v2144, %v2196
  %v2217 = vsub.f32 %v2153, %v2205
  %v2218 = vsub.f32 %v2162, %v2214
  %v2219 = vxor.u32 %v2215, 2147483648
  %v2220 = vxor.u32 %v2216, 2147483648
  %v2221 = vxor.u32 %v2217, 2147483648
  %v2222 = vxor.u32 %v2218, 2147483648
  %v2223 = vmul.f32 %v2219, 1.442695
  %v2224 = vpow.pop %v2223
  %v2225 = vmul.f32 %v2220, 1.442695
  %v2226 = vpow.pop %v2225
  %v2227 = vmul.f32 %v2221, 1.442695
  %v2228 = vpow.pop %v2227
  %v2229 = vmul.f32 %v2222, 1.442695
  %v2230 = vpow.pop %v2229
  %v2231 = vadd.f32 %v2224, 1.0
  %v2232 = vadd.f32 %v2226, 1.0
  %v2233 = vadd.f32 %v2228, 1.0
  %v2234 = vadd.f32 %v2230, 1.0
  %v2235 = vrcp.pop %v2231
  %v2236 = vmul.f32 1.0, %v2235
  %v2237 = vrcp.pop %v2232
  %v2238 = vmul.f32 1.0, %v2237
  %v2239 = vrcp.pop %v2233
  %v2240 = vmul.f32 1.0, %v2239
  %v2241 = vrcp.pop %v2234
  %v2242 = vmul.f32 1.0, %v2241
  %v2243 = vmul.f32 %v2071, %v2094
  %v2244 = vmul.f32 %v2072, %v2099
  %v2245 = vmul.f32 %v2073, %v2104
  %v2246 = vmul.f32 %v2074, %v2109
  %v2247 = vmul.f32 %v2075, %v2094
  %v2248 = vmul.f32 %v2076, %v2099
  %v2249 = vmul.f32 %v2077, %v2104
  %v2250 = vmul.f32 %v2078, %v2109
  %v2251 = vmul.f32 %v2079, %v2094
  %v2252 = vmul.f32 %v2080, %v2099
  %v2253 = vmul.f32 %v2081, %v2104
  %v2254 = vmul.f32 %v2082, %v2109
  %v2255 = vmul.f32 %v2083, %v2094
  %v2256 = vmul.f32 %v2084, %v2099
  %v2257 = vmul.f32 %v2085, %v2104
  %v2258 = vmul.f32 %v2086, %v2109
  %v2259 = vadd.f32 %v2243, %v2244
  %v2260 = vadd.f32 %v2259, %v2245
  %v2261 = vadd.f32 %v2260, %v2246
  %v2262 = vrot.slane %v2261, 4
  %v2263 = vadd.f32 %v2261, %v2262
  %v2264 = vrot.slane %v2263, 2
  %v2265 = vadd.f32 %v2263, %v2264
  %v2266 = vrot.slane %v2265, 1
  %v2267 = vadd.f32 %v2265, %v2266
  %v2268 = vadd.f32 %v2247, %v2248
  %v2269 = vadd.f32 %v2268, %v2249
  %v2270 = vadd.f32 %v2269, %v2250
  %v2271 = vrot.slane %v2270, 4
  %v2272 = vadd.f32 %v2270, %v2271
  %v2273 = vrot.slane %v2272, 2
  %v2274 = vadd.f32 %v2272, %v2273
  %v2275 = vrot.slane %v2274, 1
  %v2276 = vadd.f32 %v2274, %v2275
  %v2277 = vadd.f32 %v2251, %v2252
  %v2278 = vadd.f32 %v2277, %v2253
  %v2279 = vadd.f32 %v2278, %v2254
  %v2280 = vrot.slane %v2279, 4
  %v2281 = vadd.f32 %v2279, %v2280
  %v2282 = vrot.slane %v2281, 2
  %v2283 = vadd.f32 %v2281, %v2282
  %v2284 = vrot.slane %v2283, 1
  %v2285 = vadd.f32 %v2283, %v2284
  %v2286 = vadd.f32 %v2255, %v2256
  %v2287 = vadd.f32 %v2286, %v2257
  %v2288 = vadd.f32 %v2287, %v2258
  %v2289 = vrot.slane %v2288, 4
  %v2290 = vadd.f32 %v2288, %v2289
  %v2291 = vrot.slane %v2290, 2
  %v2292 = vadd.f32 %v2290, %v2291
  %v2293 = vrot.slane %v2292, 1
  %v2294 = vadd.f32 %v2292, %v2293
  %v2295 = vmul.f32 %v2055, %v2094
  %v2296 = vmul.f32 %v2056, %v2099
  %v2297 = vmul.f32 %v2057, %v2104
  %v2298 = vmul.f32 %v2058, %v2109
  %v2299 = vmul.f32 %v2059, %v2094
  %v2300 = vmul.f32 %v2060, %v2099
  %v2301 = vmul.f32 %v2061, %v2104
  %v2302 = vmul.f32 %v2062, %v2109
  %v2303 = vmul.f32 %v2063, %v2094
  %v2304 = vmul.f32 %v2064, %v2099
  %v2305 = vmul.f32 %v2065, %v2104
  %v2306 = vmul.f32 %v2066, %v2109
  %v2307 = vmul.f32 %v2067, %v2094
  %v2308 = vmul.f32 %v2068, %v2099
  %v2309 = vmul.f32 %v2069, %v2104
  %v2310 = vmul.f32 %v2070, %v2109
  %v2311 = vadd.f32 %v2295, %v2296
  %v2312 = vadd.f32 %v2311, %v2297
  %v2313 = vadd.f32 %v2312, %v2298
  %v2314 = vrot.slane %v2313, 4
  %v2315 = vadd.f32 %v2313, %v2314
  %v2316 = vrot.slane %v2315, 2
  %v2317 = vadd.f32 %v2315, %v2316
  %v2318 = vrot.slane %v2317, 1
  %v2319 = vadd.f32 %v2317, %v2318
  %v2320 = vadd.f32 %v2299, %v2300
  %v2321 = vadd.f32 %v2320, %v2301
  %v2322 = vadd.f32 %v2321, %v2302
  %v2323 = vrot.slane %v2322, 4
  %v2324 = vadd.f32 %v2322, %v2323
  %v2325 = vrot.slane %v2324, 2
  %v2326 = vadd.f32 %v2324, %v2325
  %v2327 = vrot.slane %v2326, 1
  %v2328 = vadd.f32 %v2326, %v2327
  %v2329 = vadd.f32 %v2303, %v2304
  %v2330 = vadd.f32 %v2329, %v2305
  %v2331 = vadd.f32 %v2330, %v2306
  %v2332 = vrot.slane %v2331, 4
  %v2333 = vadd.f32 %v2331, %v2332
  %v2334 = vrot.slane %v2333, 2
  %v2335 = vadd.f32 %v2333, %v2334
  %v2336 = vrot.slane %v2335, 1
  %v2337 = vadd.f32 %v2335, %v2336
  %v2338 = vadd.f32 %v2307, %v2308
  %v2339 = vadd.f32 %v2338, %v2309
  %v2340 = vadd.f32 %v2339, %v2310
  %v2341 = vrot.slane %v2340, 4
  %v2342 = vadd.f32 %v2340, %v2341
  %v2343 = vrot.slane %v2342, 2
  %v2344 = vadd.f32 %v2342, %v2343
  %v2345 = vrot.slane %v2344, 1
  %v2346 = vadd.f32 %v2344, %v2345
  %v2347 = vsub.f32 %v2267, %v2319
  %v2348 = vsub.f32 %v2276, %v2328
  %v2349 = vsub.f32 %v2285, %v2337
  %v2350 = vsub.f32 %v2294, %v2346
  %v2351 = vxor.u32 %v2347, 2147483648
  %v2352 = vxor.u32 %v2348, 2147483648
  %v2353 = vxor.u32 %v2349, 2147483648
  %v2354 = vxor.u32 %v2350, 2147483648
  %v2355 = vmul.f32 %v2351, 1.442695
  %v2356 = vpow.pop %v2355
  %v2357 = vmul.f32 %v2352, 1.442695
  %v2358 = vpow.pop %v2357
  %v2359 = vmul.f32 %v2353, 1.442695
  %v2360 = vpow.pop %v2359
  %v2361 = vmul.f32 %v2354, 1.442695
  %v2362 = vpow.pop %v2361
  %v2363 = vadd.f32 %v2356, 1.0
  %v2364 = vadd.f32 %v2358, 1.0
  %v2365 = vadd.f32 %v2360, 1.0
  %v2366 = vadd.f32 %v2362, 1.0
  %v2367 = vrcp.pop %v2363
  %v2368 = vmul.f32 1.0, %v2367
  %v2369 = vrcp.pop %v2364
  %v2370 = vmul.f32 1.0, %v2369
  %v2371 = vrcp.pop %v2365
  %v2372 = vmul.f32 1.0, %v2371
  %v2373 = vrcp.pop %v2366
  %v2374 = vmul.f32 1.0, %v2373
  %v2375 = vmul.f32 %v2236, %v2368
  %v2376 = vmul.f32 %v2238, %v2370
  %v2377 = vmul.f32 %v2240, %v2372
  %v2378 = vmul.f32 %v2242, %v2374
  %vm2383 = vcmask 1041409
  %v2384 = vsel %vm2383, %v2376, %v2375
  %vm2385 = vcmask 1042434
  %v2386 = vsel %vm2385, %v2377, %v2384
  %vm2387 = vcmask 1043459
  %v2388 = vsel %vm2387, %v2378, %v2386
  %2390 = vst [vmem:[%s9] sm:$0xf] %v2388
  %v2391 = vld [vmem:[%s1] sm:$0xf]
  %2393 = vset.pattern.permute.xlu0 0
  %2394 = vperm.xlu0 %2393, %v2391
  %v2395 = vpop.permute.xlu0 %2394
  %v2396 = vrot.slane %v2395, 1
  %v2397 = vrot.slane %v2395, 2
  %v2398 = vrot.slane %v2395, 3
  %v2403 = vmul.f32 %v2375, %v2395
  %v2404 = vmul.f32 %v2376, %v2396
  %v2405 = vmul.f32 %v2377, %v2397
  %v2406 = vmul.f32 %v2378, %v2398
  %v2411 = vrot.slane %v2404, 7
  %v2412 = vsel %vm2383, %v2411, %v2403
  %v2413 = vrot.slane %v2405, 6
  %v2414 = vsel %vm2385, %v2413, %v2412
  %v2415 = vrot.slane %v2406, 5
  %v2416 = vsel %vm2387, %v2415, %v2414
  %v2418 = vsel %vm74, %v2416, 0.0
  %v2419 = vrot.slane %v2418, 4
  %v2420 = vadd.f32 %v2418, %v2419
  %v2421 = vrot.slane %v2420, 2
  %v2422 = vadd.f32 %v2420, %v2421
  %v2423 = vrot.slane %v2422, 1
  %v2424 = vadd.f32 %v2422, %v2423
  %2425 = vst [vmem:[%s8] sm:$0x1] %v2424
  // Predicated region
  $region34: #{multi_reward_forward.1} parent=0 // pred_check
    _
  $region35: #{multi_reward_forward.1} parent=0 // pred_check_branch
    %2427 = sbr.rel (0) target = $region37
  $region36: #{multi_reward_forward.1} parent=0 // pred_region
    _
  $region37: #{multi_reward_forward.1} parent=0 // pred_fallthru
    _
  // Predicated region
  $region38: #{multi_reward_forward.1} parent=0 // pred_check
    _
  $region39: #{multi_reward_forward.1} parent=0 // pred_check_branch
    %2429 = sbr.rel (0) target = $region41
  $region40: #{multi_reward_forward.1} parent=0 // pred_region
    _
  $region41: #{multi_reward_forward.1} parent=0 // pred_fallthru
    _
  // Predicated region
  $region42: #{multi_reward_forward.1} parent=0 // pred_check
    _
  $region43: #{multi_reward_forward.1} parent=0 // pred_check_branch
    %2431 = sbr.rel (0) target = $region45
  $region44: #{multi_reward_forward.1} parent=0 // pred_region
    _
  $region45: #{multi_reward_forward.1} parent=0 // pred_fallthru
    _
  // Predicated region
  $region46: #{multi_reward_forward.1} parent=0 // pred_check
    _
  $region47: #{multi_reward_forward.1} parent=0 // pred_check_branch
    %2433 = sbr.rel (0) target = $region49
  $region48: #{multi_reward_forward.1} parent=0 // pred_region
    _
  $region49: #{multi_reward_forward.1} parent=0 // pred_fallthru
    _

</llo_original>
